<compile_context>
chip_gen: v7x
topology: tpu7x:2x2x1
jax: 0.10.0
libtpu: 0.0.40
codegen_flags: <defaults>
</compile_context>

<pallas_src>
import functools

import jax
import jax.numpy as jnp
import numpy as np
from jax import lax
from jax.experimental import pallas as pl
from jax.experimental.pallas import tpu as pltpu


# ----------------------------- Pallas kernel -------------------------------

def _decider_kernel(T, B, H,
                    x2d_ref,     # (T*B, D) f32  time-major inputs, flattened
                    idx_ref,     # (B, 1)  i32  seq_len - 1 per row
                    wih0_ref,    # (D, 4H) f32  layer-0 input->gates (i|f|g|o)
                    b0_ref,      # (1, 4H) f32  layer-0 bias (b_ih + b_hh)
                    wbig_ref,    # (2H,8H) f32  fused [h0;h1] -> [rec0 | pre1]
                    b1_ref,      # (1, 4H) f32  layer-1 bias (b_ih + b_hh)
                    wc_ref,      # (H, 2)  f32  classifier weight (pre-transposed)
                    bc_ref,      # (1, 2)  f32  classifier bias
                    logits_ref,  # out (B, 2) f32
                    final_ref):  # out (B, H) f32  (== self.hidden_rep)
    H4 = 4 * H

    # Hoist all weights/biases into values once (vreg-resident across the loop).
    wih0 = wih0_ref[...]
    b0 = b0_ref[...]
    wbig = wbig_ref[...]
    b1 = b1_ref[...]
    idx = idx_ref[...]                                       # (B, 1) int32

    # Layer-0 input projection for ALL timesteps in one matmul, off the
    # recurrent dependency chain (bias folded in here).
    xproj = jnp.dot(x2d_ref[...], wih0,
                    preferred_element_type=jnp.float32) + b0  # (T*B, 4H)

    def cell(pre, c):
        # 2 full-width EUP ops instead of 4 narrow ones; slices are VPU/XLU.
        sig = jax.nn.sigmoid(pre)                             # (B, 4H)
        th = jnp.tanh(pre)                                    # (B, 4H)
        i = sig[:, 0 * H:1 * H]
        f = sig[:, 1 * H:2 * H]
        g = th[:, 2 * H:3 * H]
        o = sig[:, 3 * H:4 * H]
        c_new = f * c + i * g
        h_new = o * jnp.tanh(c_new)
        return h_new, c_new

    zeros = jnp.zeros((B, H), jnp.float32)
    h0 = c0 = h1 = c1 = fin = zeros

    # Fully unrolled, layer-pipelined time loop: ONE fused matmul per step.
    # At iteration t the matmul consumes h0[t-1] and h1[t-2] and yields both
    # the layer-0 recurrent term for step t and the layer-1 pre-acts for t-1.
    for t in range(T + 1):
        if t == 0:
            # First layer-0 step: recurrent input is zero, so skip the matmul.
            h0, c0 = cell(xproj[0:B, :], c0)
        else:
            z = jnp.dot(jnp.concatenate([h0, h1], axis=1), wbig,
                        preferred_element_type=jnp.float32)   # (B, 8H)

            # ----- layer 1, step t-1 --------------------------------------
            h1, c1 = cell(z[:, H4:] + b1, c1)

            # gather the layer-1 output at (t-1) == seq_len-1 per batch row
            # TODO(synk): seq_len == 0 yields zeros here (PyTorch's -1 wraps).
            m = (idx == (t - 1)).astype(jnp.float32)          # (B, 1) one-hot
            fin = fin + m * h1

            # ----- layer 0, step t -----------------------------------------
            if t < T:
                h0, c0 = cell(xproj[t * B:(t + 1) * B, :] + z[:, :H4], c0)

    final_ref[...] = fin
    logits_ref[...] = (jnp.dot(fin, wc_ref[...],
                               preferred_element_type=jnp.float32)
                       + bc_ref[...])


# ------------------------------- Wrapper ------------------------------------

def decider_forward(sequences, seq_lengths, params):
    """sequences: (B, T, D) f32 (batch-first), seq_lengths: (B,) int32."""
    B, T, D = sequences.shape
    H = params["wbig"].shape[0] // 2

    # Glue (mirrors torch.transpose); flatten (T, B) so the layer-0 input
    # projection is a single well-shaped matmul inside the kernel.
    x2d = jnp.transpose(sequences, (1, 0, 2)).reshape(T * B, D).astype(jnp.float32)
    idx_last = (seq_lengths - 1).astype(jnp.int32).reshape(B, 1)

    vmem = pl.BlockSpec(memory_space=pltpu.MemorySpace.VMEM)
    kernel = functools.partial(_decider_kernel, T, B, H)
    logits, final = pl.pallas_call(
        kernel,
        out_shape=(jax.ShapeDtypeStruct((B, 2), jnp.float32),
                   jax.ShapeDtypeStruct((B, H), jnp.float32)),
        in_specs=[vmem] * 8,
        out_specs=(vmem, vmem),
    )(x2d, idx_last,
      params["wih0"], params["b0"],
      params["wbig"], params["b1"],
      params["wc"], params["bc"])
    return logits, final


# ------------------------ Deterministic parameter init ----------------------

def init_params(key, input_dimension=4, hidden_size=12):
    D, H = input_dimension, hidden_size
    k = 1.0 / np.sqrt(H)
    keys = jax.random.split(key, 10)

    def u(k_, shape):
        return jax.random.uniform(k_, shape, jnp.float32, -k, k)

    raw = {
        # PyTorch nn.LSTM parameter shapes (gate order i, f, g, o).
        "wih_l0": u(keys[0], (4 * H, D)),
        "whh_l0": u(keys[1], (4 * H, H)),
        "bih_l0": u(keys[2], (4 * H,)),
        "bhh_l0": u(keys[3], (4 * H,)),
        "wih_l1": u(keys[4], (4 * H, H)),
        "whh_l1": u(keys[5], (4 * H, H)),
        "bih_l1": u(keys[6], (4 * H,)),
        "bhh_l1": u(keys[7], (4 * H,)),
        # nn.Linear(hidden_size, 2)
        "wc": u(keys[8], (2, H)),
        "bc": u(keys[9], (2,)),
    }

    # Kernel-friendly packing.
    #   wbig (2H, 8H):  [h0, h1] @ wbig = [h0@whh_l0ᵀ | h0@wih_l1ᵀ + h1@whh_l1ᵀ]
    top = jnp.concatenate([raw["whh_l0"].T, raw["wih_l1"].T], axis=1)   # (H, 8H)
    bot = jnp.concatenate([jnp.zeros((H, 4 * H), jnp.float32),
                           raw["whh_l1"].T], axis=1)                    # (H, 8H)
    params = {
        "wih0": raw["wih_l0"].T,                                        # (D, 4H)
        "b0": (raw["bih_l0"] + raw["bhh_l0"]).reshape(1, 4 * H),        # (1, 4H)
        "wbig": jnp.concatenate([top, bot], axis=0),                    # (2H,8H)
        "b1": (raw["bih_l1"] + raw["bhh_l1"]).reshape(1, 4 * H),        # (1, 4H)
        "wc": raw["wc"].T,                                              # (H, 2)
        "bc": raw["bc"].reshape(1, 2),                                  # (1, 2)
    }
    return params, raw


# --------------------------- Pure-JAX reference ------------------------------

def reference_forward(sequences, seq_lengths, raw):
    x = jnp.transpose(sequences, (1, 0, 2))                  # (T, B, D)
    T, B, _ = x.shape
    H = raw["whh_l0"].shape[1]

    def lstm_layer(inp, w_ih, w_hh, b_ih, b_hh):
        def cell(carry, x_t):
            h, c = carry
            gates = x_t @ w_ih.T + h @ w_hh.T + b_ih + b_hh
            i, f, g, o = jnp.split(gates, 4, axis=-1)
            i = jax.nn.sigmoid(i)
            f = jax.nn.sigmoid(f)
            g = jnp.tanh(g)
            o = jax.nn.sigmoid(o)
            c = f * c + i * g
            h = o * jnp.tanh(c)
            return (h, c), h
        h0 = jnp.zeros((B, H), jnp.float32)
        c0 = jnp.zeros((B, H), jnp.float32)
        _, outs = lax.scan(cell, (h0, c0), inp)
        return outs

    out0 = lstm_layer(x, raw["wih_l0"], raw["whh_l0"], raw["bih_l0"], raw["bhh_l0"])
    out1 = lstm_layer(out0, raw["wih_l1"], raw["whh_l1"], raw["bih_l1"], raw["bhh_l1"])
    final = out1[seq_lengths - 1, jnp.arange(B), :]
    logits = final @ raw["wc"].T + raw["bc"]
    return logits, final


# --------------------------------- Main --------------------------------------

if __name__ == "__main__":
    B, T, D, H = 2, 8, 4, 12

    key = jax.random.PRNGKey(0)
    k_param, k_seq = jax.random.split(key)

    params, raw = init_params(k_param, input_dimension=D, hidden_size=H)
    sequences = jax.random.normal(k_seq, (B, T, D), jnp.float32)   # (B, T, D)
    seq_lengths = jnp.array([T, 5], dtype=jnp.int32)               # (B,)

    logits, hidden_rep = decider_forward(sequences, seq_lengths, params)
    jax.block_until_ready((logits, hidden_rep))

    ref_logits, ref_hidden = reference_forward(sequences, seq_lengths, raw)
    np.testing.assert_allclose(np.asarray(logits), np.asarray(ref_logits),
                               rtol=1e-5, atol=1e-5)
    np.testing.assert_allclose(np.asarray(hidden_rep), np.asarray(ref_hidden),
                               rtol=1e-5, atol=1e-5)

    # TODO(synk): CrossEntropyLoss / Adam / softmax+argmax classify are
    # training-time utilities outside forward(); not implemented here.
    print("KERNEL_OK")
</pallas_src>

<mosaic_0001>
module attributes {stable_mosaic.version = 11 : i64} {
  func.func @_decider_kernel(%arg0: memref<16x4xf32, #tpu.memory_space<vmem>>, %arg1: memref<2x1xi32, #tpu.memory_space<vmem>>, %arg2: memref<4x48xf32, #tpu.memory_space<vmem>>, %arg3: memref<1x48xf32, #tpu.memory_space<vmem>>, %arg4: memref<24x96xf32, #tpu.memory_space<vmem>>, %arg5: memref<1x48xf32, #tpu.memory_space<vmem>>, %arg6: memref<12x2xf32, #tpu.memory_space<vmem>>, %arg7: memref<1x2xf32, #tpu.memory_space<vmem>>, %arg8: memref<2x2xf32, #tpu.memory_space<vmem>>, %arg9: memref<2x12xf32, #tpu.memory_space<vmem>>) attributes {dimension_semantics = [], scalar_prefetch = 0 : i64, scratch_operands = 0 : i64, tpu.core_type = #tpu.core_type<tc>} {
    %c0 = arith.constant 0 : index
    %c0_0 = arith.constant 0 : index
    %0 = vector.load %arg2[%c0, %c0_0] : memref<4x48xf32, #tpu.memory_space<vmem>>, vector<4x48xf32>
    %c0_1 = arith.constant 0 : index
    %c0_2 = arith.constant 0 : index
    %1 = vector.load %arg3[%c0_1, %c0_2] : memref<1x48xf32, #tpu.memory_space<vmem>>, vector<1x48xf32>
    %c0_3 = arith.constant 0 : index
    %c0_4 = arith.constant 0 : index
    %2 = vector.load %arg4[%c0_3, %c0_4] : memref<24x96xf32, #tpu.memory_space<vmem>>, vector<24x96xf32>
    %c0_5 = arith.constant 0 : index
    %c0_6 = arith.constant 0 : index
    %3 = vector.load %arg5[%c0_5, %c0_6] : memref<1x48xf32, #tpu.memory_space<vmem>>, vector<1x48xf32>
    %c0_7 = arith.constant 0 : index
    %c0_8 = arith.constant 0 : index
    %4 = vector.load %arg1[%c0_7, %c0_8] : memref<2x1xi32, #tpu.memory_space<vmem>>, vector<2x1xi32>
    %c0_9 = arith.constant 0 : index
    %c0_10 = arith.constant 0 : index
    %5 = vector.load %arg0[%c0_9, %c0_10] : memref<16x4xf32, #tpu.memory_space<vmem>>, vector<16x4xf32>
    %cst = arith.constant dense<0.000000e+00> : vector<16x48xf32>
    %6 = tpu.matmul %5, %0, %cst {dimension_numbers = #tpu.dot_dimension_numbers<[1], [0], [0], [1], [0, 0, 1, 1], [], []>} : vector<16x4xf32>, vector<4x48xf32>, vector<16x48xf32> -> vector<16x48xf32>
    %7 = vector.broadcast %1 : vector<1x48xf32> to vector<16x48xf32>
    %8 = arith.addf %6, %7 : vector<16x48xf32>
    %cst_11 = arith.constant 0.000000e+00 : f32
    %9 = vector.broadcast %cst_11 : f32 to vector<2x12xf32>
    %10 = vector.extract_strided_slice %8 {offsets = [0, 0], sizes = [2, 48], strides = [1, 1]} : vector<16x48xf32> to vector<2x48xf32>
    %11 = arith.negf %10 : vector<2x48xf32>
    %12 = math.exp %11 : vector<2x48xf32>
    %cst_12 = arith.constant 1.000000e+00 : f32
    %13 = vector.broadcast %cst_12 : f32 to vector<2x48xf32>
    %14 = arith.addf %13, %12 : vector<2x48xf32>
    %15 = arith.divf %13, %14 : vector<2x48xf32>
    %16 = math.tanh %10 : vector<2x48xf32>
    %17 = vector.extract_strided_slice %15 {offsets = [0, 0], sizes = [2, 12], strides = [1, 1]} : vector<2x48xf32> to vector<2x12xf32>
    %18 = vector.extract_strided_slice %15 {offsets = [0, 12], sizes = [2, 12], strides = [1, 1]} : vector<2x48xf32> to vector<2x12xf32>
    %19 = vector.extract_strided_slice %16 {offsets = [0, 24], sizes = [2, 12], strides = [1, 1]} : vector<2x48xf32> to vector<2x12xf32>
    %20 = vector.extract_strided_slice %15 {offsets = [0, 36], sizes = [2, 12], strides = [1, 1]} : vector<2x48xf32> to vector<2x12xf32>
    %21 = arith.mulf %18, %9 : vector<2x12xf32>
    %22 = arith.mulf %17, %19 : vector<2x12xf32>
    %23 = arith.addf %21, %22 : vector<2x12xf32>
    %24 = math.tanh %23 : vector<2x12xf32>
    %25 = arith.mulf %20, %24 : vector<2x12xf32>
    %26 = tpu.concatenate %25, %9 in 1 : vector<2x12xf32>, vector<2x12xf32> -> vector<2x24xf32>
    %cst_13 = arith.constant dense<0.000000e+00> : vector<2x96xf32>
    %27 = tpu.matmul %26, %2, %cst_13 {dimension_numbers = #tpu.dot_dimension_numbers<[1], [0], [0], [1], [0, 0, 1, 1], [], []>} : vector<2x24xf32>, vector<24x96xf32>, vector<2x96xf32> -> vector<2x96xf32>
    %28 = vector.extract_strided_slice %27 {offsets = [0, 48], sizes = [2, 48], strides = [1, 1]} : vector<2x96xf32> to vector<2x48xf32>
    %29 = vector.broadcast %3 : vector<1x48xf32> to vector<2x48xf32>
    %30 = arith.addf %28, %29 : vector<2x48xf32>
    %31 = arith.negf %30 : vector<2x48xf32>
    %32 = math.exp %31 : vector<2x48xf32>
    %cst_14 = arith.constant 1.000000e+00 : f32
    %33 = vector.broadcast %cst_14 : f32 to vector<2x48xf32>
    %34 = arith.addf %33, %32 : vector<2x48xf32>
    %35 = arith.divf %33, %34 : vector<2x48xf32>
    %36 = math.tanh %30 : vector<2x48xf32>
    %37 = vector.extract_strided_slice %35 {offsets = [0, 0], sizes = [2, 12], strides = [1, 1]} : vector<2x48xf32> to vector<2x12xf32>
    %38 = vector.extract_strided_slice %35 {offsets = [0, 12], sizes = [2, 12], strides = [1, 1]} : vector<2x48xf32> to vector<2x12xf32>
    %39 = vector.extract_strided_slice %36 {offsets = [0, 24], sizes = [2, 12], strides = [1, 1]} : vector<2x48xf32> to vector<2x12xf32>
    %40 = vector.extract_strided_slice %35 {offsets = [0, 36], sizes = [2, 12], strides = [1, 1]} : vector<2x48xf32> to vector<2x12xf32>
    %41 = arith.mulf %38, %9 : vector<2x12xf32>
    %42 = arith.mulf %37, %39 : vector<2x12xf32>
    %43 = arith.addf %41, %42 : vector<2x12xf32>
    %44 = math.tanh %43 : vector<2x12xf32>
    %45 = arith.mulf %40, %44 : vector<2x12xf32>
    %c0_i32 = arith.constant 0 : i32
    %46 = vector.broadcast %c0_i32 : i32 to vector<2x1xi32>
    %47 = arith.cmpi eq, %4, %46 : vector<2x1xi32>
    %48 = arith.extui %47 : vector<2x1xi1> to vector<2x1xi32>
    %49 = arith.sitofp %48 : vector<2x1xi32> to vector<2x1xf32>
    %50 = vector.broadcast %49 : vector<2x1xf32> to vector<2x12xf32>
    %51 = arith.mulf %50, %45 : vector<2x12xf32>
    %52 = arith.addf %9, %51 : vector<2x12xf32>
    %53 = vector.extract_strided_slice %8 {offsets = [2, 0], sizes = [2, 48], strides = [1, 1]} : vector<16x48xf32> to vector<2x48xf32>
    %54 = vector.extract_strided_slice %27 {offsets = [0, 0], sizes = [2, 48], strides = [1, 1]} : vector<2x96xf32> to vector<2x48xf32>
    %55 = arith.addf %53, %54 : vector<2x48xf32>
    %56 = arith.negf %55 : vector<2x48xf32>
    %57 = math.exp %56 : vector<2x48xf32>
    %cst_15 = arith.constant 1.000000e+00 : f32
    %58 = vector.broadcast %cst_15 : f32 to vector<2x48xf32>
    %59 = arith.addf %58, %57 : vector<2x48xf32>
    %60 = arith.divf %58, %59 : vector<2x48xf32>
    %61 = math.tanh %55 : vector<2x48xf32>
    %62 = vector.extract_strided_slice %60 {offsets = [0, 0], sizes = [2, 12], strides = [1, 1]} : vector<2x48xf32> to vector<2x12xf32>
    %63 = vector.extract_strided_slice %60 {offsets = [0, 12], sizes = [2, 12], strides = [1, 1]} : vector<2x48xf32> to vector<2x12xf32>
    %64 = vector.extract_strided_slice %61 {offsets = [0, 24], sizes = [2, 12], strides = [1, 1]} : vector<2x48xf32> to vector<2x12xf32>
    %65 = vector.extract_strided_slice %60 {offsets = [0, 36], sizes = [2, 12], strides = [1, 1]} : vector<2x48xf32> to vector<2x12xf32>
    %66 = arith.mulf %63, %23 : vector<2x12xf32>
    %67 = arith.mulf %62, %64 : vector<2x12xf32>
    %68 = arith.addf %66, %67 : vector<2x12xf32>
    %69 = math.tanh %68 : vector<2x12xf32>
    %70 = arith.mulf %65, %69 : vector<2x12xf32>
    %71 = tpu.concatenate %70, %45 in 1 : vector<2x12xf32>, vector<2x12xf32> -> vector<2x24xf32>
    %cst_16 = arith.constant dense<0.000000e+00> : vector<2x96xf32>
    %72 = tpu.matmul %71, %2, %cst_16 {dimension_numbers = #tpu.dot_dimension_numbers<[1], [0], [0], [1], [0, 0, 1, 1], [], []>} : vector<2x24xf32>, vector<24x96xf32>, vector<2x96xf32> -> vector<2x96xf32>
    %73 = vector.extract_strided_slice %72 {offsets = [0, 48], sizes = [2, 48], strides = [1, 1]} : vector<2x96xf32> to vector<2x48xf32>
    %74 = vector.broadcast %3 : vector<1x48xf32> to vector<2x48xf32>
    %75 = arith.addf %73, %74 : vector<2x48xf32>
    %76 = arith.negf %75 : vector<2x48xf32>
    %77 = math.exp %76 : vector<2x48xf32>
    %cst_17 = arith.constant 1.000000e+00 : f32
    %78 = vector.broadcast %cst_17 : f32 to vector<2x48xf32>
    %79 = arith.addf %78, %77 : vector<2x48xf32>
    %80 = arith.divf %78, %79 : vector<2x48xf32>
    %81 = math.tanh %75 : vector<2x48xf32>
    %82 = vector.extract_strided_slice %80 {offsets = [0, 0], sizes = [2, 12], strides = [1, 1]} : vector<2x48xf32> to vector<2x12xf32>
    %83 = vector.extract_strided_slice %80 {offsets = [0, 12], sizes = [2, 12], strides = [1, 1]} : vector<2x48xf32> to vector<2x12xf32>
    %84 = vector.extract_strided_slice %81 {offsets = [0, 24], sizes = [2, 12], strides = [1, 1]} : vector<2x48xf32> to vector<2x12xf32>
    %85 = vector.extract_strided_slice %80 {offsets = [0, 36], sizes = [2, 12], strides = [1, 1]} : vector<2x48xf32> to vector<2x12xf32>
    %86 = arith.mulf %83, %43 : vector<2x12xf32>
    %87 = arith.mulf %82, %84 : vector<2x12xf32>
    %88 = arith.addf %86, %87 : vector<2x12xf32>
    %89 = math.tanh %88 : vector<2x12xf32>
    %90 = arith.mulf %85, %89 : vector<2x12xf32>
    %c1_i32 = arith.constant 1 : i32
    %91 = vector.broadcast %c1_i32 : i32 to vector<2x1xi32>
    %92 = arith.cmpi eq, %4, %91 : vector<2x1xi32>
    %93 = arith.extui %92 : vector<2x1xi1> to vector<2x1xi32>
    %94 = arith.sitofp %93 : vector<2x1xi32> to vector<2x1xf32>
    %95 = vector.broadcast %94 : vector<2x1xf32> to vector<2x12xf32>
    %96 = arith.mulf %95, %90 : vector<2x12xf32>
    %97 = arith.addf %52, %96 : vector<2x12xf32>
    %98 = vector.extract_strided_slice %8 {offsets = [4, 0], sizes = [2, 48], strides = [1, 1]} : vector<16x48xf32> to vector<2x48xf32>
    %99 = vector.extract_strided_slice %72 {offsets = [0, 0], sizes = [2, 48], strides = [1, 1]} : vector<2x96xf32> to vector<2x48xf32>
    %100 = arith.addf %98, %99 : vector<2x48xf32>
    %101 = arith.negf %100 : vector<2x48xf32>
    %102 = math.exp %101 : vector<2x48xf32>
    %cst_18 = arith.constant 1.000000e+00 : f32
    %103 = vector.broadcast %cst_18 : f32 to vector<2x48xf32>
    %104 = arith.addf %103, %102 : vector<2x48xf32>
    %105 = arith.divf %103, %104 : vector<2x48xf32>
    %106 = math.tanh %100 : vector<2x48xf32>
    %107 = vector.extract_strided_slice %105 {offsets = [0, 0], sizes = [2, 12], strides = [1, 1]} : vector<2x48xf32> to vector<2x12xf32>
    %108 = vector.extract_strided_slice %105 {offsets = [0, 12], sizes = [2, 12], strides = [1, 1]} : vector<2x48xf32> to vector<2x12xf32>
    %109 = vector.extract_strided_slice %106 {offsets = [0, 24], sizes = [2, 12], strides = [1, 1]} : vector<2x48xf32> to vector<2x12xf32>
    %110 = vector.extract_strided_slice %105 {offsets = [0, 36], sizes = [2, 12], strides = [1, 1]} : vector<2x48xf32> to vector<2x12xf32>
    %111 = arith.mulf %108, %68 : vector<2x12xf32>
    %112 = arith.mulf %107, %109 : vector<2x12xf32>
    %113 = arith.addf %111, %112 : vector<2x12xf32>
    %114 = math.tanh %113 : vector<2x12xf32>
    %115 = arith.mulf %110, %114 : vector<2x12xf32>
    %116 = tpu.concatenate %115, %90 in 1 : vector<2x12xf32>, vector<2x12xf32> -> vector<2x24xf32>
    %cst_19 = arith.constant dense<0.000000e+00> : vector<2x96xf32>
    %117 = tpu.matmul %116, %2, %cst_19 {dimension_numbers = #tpu.dot_dimension_numbers<[1], [0], [0], [1], [0, 0, 1, 1], [], []>} : vector<2x24xf32>, vector<24x96xf32>, vector<2x96xf32> -> vector<2x96xf32>
    %118 = vector.extract_strided_slice %117 {offsets = [0, 48], sizes = [2, 48], strides = [1, 1]} : vector<2x96xf32> to vector<2x48xf32>
    %119 = vector.broadcast %3 : vector<1x48xf32> to vector<2x48xf32>
    %120 = arith.addf %118, %119 : vector<2x48xf32>
    %121 = arith.negf %120 : vector<2x48xf32>
    %122 = math.exp %121 : vector<2x48xf32>
    %cst_20 = arith.constant 1.000000e+00 : f32
    %123 = vector.broadcast %cst_20 : f32 to vector<2x48xf32>
    %124 = arith.addf %123, %122 : vector<2x48xf32>
    %125 = arith.divf %123, %124 : vector<2x48xf32>
    %126 = math.tanh %120 : vector<2x48xf32>
    %127 = vector.extract_strided_slice %125 {offsets = [0, 0], sizes = [2, 12], strides = [1, 1]} : vector<2x48xf32> to vector<2x12xf32>
    %128 = vector.extract_strided_slice %125 {offsets = [0, 12], sizes = [2, 12], strides = [1, 1]} : vector<2x48xf32> to vector<2x12xf32>
    %129 = vector.extract_strided_slice %126 {offsets = [0, 24], sizes = [2, 12], strides = [1, 1]} : vector<2x48xf32> to vector<2x12xf32>
    %130 = vector.extract_strided_slice %125 {offsets = [0, 36], sizes = [2, 12], strides = [1, 1]} : vector<2x48xf32> to vector<2x12xf32>
    %131 = arith.mulf %128, %88 : vector<2x12xf32>
    %132 = arith.mulf %127, %129 : vector<2x12xf32>
    %133 = arith.addf %131, %132 : vector<2x12xf32>
    %134 = math.tanh %133 : vector<2x12xf32>
    %135 = arith.mulf %130, %134 : vector<2x12xf32>
    %c2_i32 = arith.constant 2 : i32
    %136 = vector.broadcast %c2_i32 : i32 to vector<2x1xi32>
    %137 = arith.cmpi eq, %4, %136 : vector<2x1xi32>
    %138 = arith.extui %137 : vector<2x1xi1> to vector<2x1xi32>
    %139 = arith.sitofp %138 : vector<2x1xi32> to vector<2x1xf32>
    %140 = vector.broadcast %139 : vector<2x1xf32> to vector<2x12xf32>
    %141 = arith.mulf %140, %135 : vector<2x12xf32>
    %142 = arith.addf %97, %141 : vector<2x12xf32>
    %143 = vector.extract_strided_slice %8 {offsets = [6, 0], sizes = [2, 48], strides = [1, 1]} : vector<16x48xf32> to vector<2x48xf32>
    %144 = vector.extract_strided_slice %117 {offsets = [0, 0], sizes = [2, 48], strides = [1, 1]} : vector<2x96xf32> to vector<2x48xf32>
    %145 = arith.addf %143, %144 : vector<2x48xf32>
    %146 = arith.negf %145 : vector<2x48xf32>
    %147 = math.exp %146 : vector<2x48xf32>
    %cst_21 = arith.constant 1.000000e+00 : f32
    %148 = vector.broadcast %cst_21 : f32 to vector<2x48xf32>
    %149 = arith.addf %148, %147 : vector<2x48xf32>
    %150 = arith.divf %148, %149 : vector<2x48xf32>
    %151 = math.tanh %145 : vector<2x48xf32>
    %152 = vector.extract_strided_slice %150 {offsets = [0, 0], sizes = [2, 12], strides = [1, 1]} : vector<2x48xf32> to vector<2x12xf32>
    %153 = vector.extract_strided_slice %150 {offsets = [0, 12], sizes = [2, 12], strides = [1, 1]} : vector<2x48xf32> to vector<2x12xf32>
    %154 = vector.extract_strided_slice %151 {offsets = [0, 24], sizes = [2, 12], strides = [1, 1]} : vector<2x48xf32> to vector<2x12xf32>
    %155 = vector.extract_strided_slice %150 {offsets = [0, 36], sizes = [2, 12], strides = [1, 1]} : vector<2x48xf32> to vector<2x12xf32>
    %156 = arith.mulf %153, %113 : vector<2x12xf32>
    %157 = arith.mulf %152, %154 : vector<2x12xf32>
    %158 = arith.addf %156, %157 : vector<2x12xf32>
    %159 = math.tanh %158 : vector<2x12xf32>
    %160 = arith.mulf %155, %159 : vector<2x12xf32>
    %161 = tpu.concatenate %160, %135 in 1 : vector<2x12xf32>, vector<2x12xf32> -> vector<2x24xf32>
    %cst_22 = arith.constant dense<0.000000e+00> : vector<2x96xf32>
    %162 = tpu.matmul %161, %2, %cst_22 {dimension_numbers = #tpu.dot_dimension_numbers<[1], [0], [0], [1], [0, 0, 1, 1], [], []>} : vector<2x24xf32>, vector<24x96xf32>, vector<2x96xf32> -> vector<2x96xf32>
    %163 = vector.extract_strided_slice %162 {offsets = [0, 48], sizes = [2, 48], strides = [1, 1]} : vector<2x96xf32> to vector<2x48xf32>
    %164 = vector.broadcast %3 : vector<1x48xf32> to vector<2x48xf32>
    %165 = arith.addf %163, %164 : vector<2x48xf32>
    %166 = arith.negf %165 : vector<2x48xf32>
    %167 = math.exp %166 : vector<2x48xf32>
    %cst_23 = arith.constant 1.000000e+00 : f32
    %168 = vector.broadcast %cst_23 : f32 to vector<2x48xf32>
    %169 = arith.addf %168, %167 : vector<2x48xf32>
    %170 = arith.divf %168, %169 : vector<2x48xf32>
    %171 = math.tanh %165 : vector<2x48xf32>
    %172 = vector.extract_strided_slice %170 {offsets = [0, 0], sizes = [2, 12], strides = [1, 1]} : vector<2x48xf32> to vector<2x12xf32>
    %173 = vector.extract_strided_slice %170 {offsets = [0, 12], sizes = [2, 12], strides = [1, 1]} : vector<2x48xf32> to vector<2x12xf32>
    %174 = vector.extract_strided_slice %171 {offsets = [0, 24], sizes = [2, 12], strides = [1, 1]} : vector<2x48xf32> to vector<2x12xf32>
    %175 = vector.extract_strided_slice %170 {offsets = [0, 36], sizes = [2, 12], strides = [1, 1]} : vector<2x48xf32> to vector<2x12xf32>
    %176 = arith.mulf %173, %133 : vector<2x12xf32>
    %177 = arith.mulf %172, %174 : vector<2x12xf32>
    %178 = arith.addf %176, %177 : vector<2x12xf32>
    %179 = math.tanh %178 : vector<2x12xf32>
    %180 = arith.mulf %175, %179 : vector<2x12xf32>
    %c3_i32 = arith.constant 3 : i32
    %181 = vector.broadcast %c3_i32 : i32 to vector<2x1xi32>
    %182 = arith.cmpi eq, %4, %181 : vector<2x1xi32>
    %183 = arith.extui %182 : vector<2x1xi1> to vector<2x1xi32>
    %184 = arith.sitofp %183 : vector<2x1xi32> to vector<2x1xf32>
    %185 = vector.broadcast %184 : vector<2x1xf32> to vector<2x12xf32>
    %186 = arith.mulf %185, %180 : vector<2x12xf32>
    %187 = arith.addf %142, %186 : vector<2x12xf32>
    %188 = vector.extract_strided_slice %8 {offsets = [8, 0], sizes = [2, 48], strides = [1, 1]} : vector<16x48xf32> to vector<2x48xf32>
    %189 = vector.extract_strided_slice %162 {offsets = [0, 0], sizes = [2, 48], strides = [1, 1]} : vector<2x96xf32> to vector<2x48xf32>
    %190 = arith.addf %188, %189 : vector<2x48xf32>
    %191 = arith.negf %190 : vector<2x48xf32>
    %192 = math.exp %191 : vector<2x48xf32>
    %cst_24 = arith.constant 1.000000e+00 : f32
    %193 = vector.broadcast %cst_24 : f32 to vector<2x48xf32>
    %194 = arith.addf %193, %192 : vector<2x48xf32>
    %195 = arith.divf %193, %194 : vector<2x48xf32>
    %196 = math.tanh %190 : vector<2x48xf32>
    %197 = vector.extract_strided_slice %195 {offsets = [0, 0], sizes = [2, 12], strides = [1, 1]} : vector<2x48xf32> to vector<2x12xf32>
    %198 = vector.extract_strided_slice %195 {offsets = [0, 12], sizes = [2, 12], strides = [1, 1]} : vector<2x48xf32> to vector<2x12xf32>
    %199 = vector.extract_strided_slice %196 {offsets = [0, 24], sizes = [2, 12], strides = [1, 1]} : vector<2x48xf32> to vector<2x12xf32>
    %200 = vector.extract_strided_slice %195 {offsets = [0, 36], sizes = [2, 12], strides = [1, 1]} : vector<2x48xf32> to vector<2x12xf32>
    %201 = arith.mulf %198, %158 : vector<2x12xf32>
    %202 = arith.mulf %197, %199 : vector<2x12xf32>
    %203 = arith.addf %201, %202 : vector<2x12xf32>
    %204 = math.tanh %203 : vector<2x12xf32>
    %205 = arith.mulf %200, %204 : vector<2x12xf32>
    %206 = tpu.concatenate %205, %180 in 1 : vector<2x12xf32>, vector<2x12xf32> -> vector<2x24xf32>
    %cst_25 = arith.constant dense<0.000000e+00> : vector<2x96xf32>
    %207 = tpu.matmul %206, %2, %cst_25 {dimension_numbers = #tpu.dot_dimension_numbers<[1], [0], [0], [1], [0, 0, 1, 1], [], []>} : vector<2x24xf32>, vector<24x96xf32>, vector<2x96xf32> -> vector<2x96xf32>
    %208 = vector.extract_strided_slice %207 {offsets = [0, 48], sizes = [2, 48], strides = [1, 1]} : vector<2x96xf32> to vector<2x48xf32>
    %209 = vector.broadcast %3 : vector<1x48xf32> to vector<2x48xf32>
    %210 = arith.addf %208, %209 : vector<2x48xf32>
    %211 = arith.negf %210 : vector<2x48xf32>
    %212 = math.exp %211 : vector<2x48xf32>
    %cst_26 = arith.constant 1.000000e+00 : f32
    %213 = vector.broadcast %cst_26 : f32 to vector<2x48xf32>
    %214 = arith.addf %213, %212 : vector<2x48xf32>
    %215 = arith.divf %213, %214 : vector<2x48xf32>
    %216 = math.tanh %210 : vector<2x48xf32>
    %217 = vector.extract_strided_slice %215 {offsets = [0, 0], sizes = [2, 12], strides = [1, 1]} : vector<2x48xf32> to vector<2x12xf32>
    %218 = vector.extract_strided_slice %215 {offsets = [0, 12], sizes = [2, 12], strides = [1, 1]} : vector<2x48xf32> to vector<2x12xf32>
    %219 = vector.extract_strided_slice %216 {offsets = [0, 24], sizes = [2, 12], strides = [1, 1]} : vector<2x48xf32> to vector<2x12xf32>
    %220 = vector.extract_strided_slice %215 {offsets = [0, 36], sizes = [2, 12], strides = [1, 1]} : vector<2x48xf32> to vector<2x12xf32>
    %221 = arith.mulf %218, %178 : vector<2x12xf32>
    %222 = arith.mulf %217, %219 : vector<2x12xf32>
    %223 = arith.addf %221, %222 : vector<2x12xf32>
    %224 = math.tanh %223 : vector<2x12xf32>
    %225 = arith.mulf %220, %224 : vector<2x12xf32>
    %c4_i32 = arith.constant 4 : i32
    %226 = vector.broadcast %c4_i32 : i32 to vector<2x1xi32>
    %227 = arith.cmpi eq, %4, %226 : vector<2x1xi32>
    %228 = arith.extui %227 : vector<2x1xi1> to vector<2x1xi32>
    %229 = arith.sitofp %228 : vector<2x1xi32> to vector<2x1xf32>
    %230 = vector.broadcast %229 : vector<2x1xf32> to vector<2x12xf32>
    %231 = arith.mulf %230, %225 : vector<2x12xf32>
    %232 = arith.addf %187, %231 : vector<2x12xf32>
    %233 = vector.extract_strided_slice %8 {offsets = [10, 0], sizes = [2, 48], strides = [1, 1]} : vector<16x48xf32> to vector<2x48xf32>
    %234 = vector.extract_strided_slice %207 {offsets = [0, 0], sizes = [2, 48], strides = [1, 1]} : vector<2x96xf32> to vector<2x48xf32>
    %235 = arith.addf %233, %234 : vector<2x48xf32>
    %236 = arith.negf %235 : vector<2x48xf32>
    %237 = math.exp %236 : vector<2x48xf32>
    %cst_27 = arith.constant 1.000000e+00 : f32
    %238 = vector.broadcast %cst_27 : f32 to vector<2x48xf32>
    %239 = arith.addf %238, %237 : vector<2x48xf32>
    %240 = arith.divf %238, %239 : vector<2x48xf32>
    %241 = math.tanh %235 : vector<2x48xf32>
    %242 = vector.extract_strided_slice %240 {offsets = [0, 0], sizes = [2, 12], strides = [1, 1]} : vector<2x48xf32> to vector<2x12xf32>
    %243 = vector.extract_strided_slice %240 {offsets = [0, 12], sizes = [2, 12], strides = [1, 1]} : vector<2x48xf32> to vector<2x12xf32>
    %244 = vector.extract_strided_slice %241 {offsets = [0, 24], sizes = [2, 12], strides = [1, 1]} : vector<2x48xf32> to vector<2x12xf32>
    %245 = vector.extract_strided_slice %240 {offsets = [0, 36], sizes = [2, 12], strides = [1, 1]} : vector<2x48xf32> to vector<2x12xf32>
    %246 = arith.mulf %243, %203 : vector<2x12xf32>
    %247 = arith.mulf %242, %244 : vector<2x12xf32>
    %248 = arith.addf %246, %247 : vector<2x12xf32>
    %249 = math.tanh %248 : vector<2x12xf32>
    %250 = arith.mulf %245, %249 : vector<2x12xf32>
    %251 = tpu.concatenate %250, %225 in 1 : vector<2x12xf32>, vector<2x12xf32> -> vector<2x24xf32>
    %cst_28 = arith.constant dense<0.000000e+00> : vector<2x96xf32>
    %252 = tpu.matmul %251, %2, %cst_28 {dimension_numbers = #tpu.dot_dimension_numbers<[1], [0], [0], [1], [0, 0, 1, 1], [], []>} : vector<2x24xf32>, vector<24x96xf32>, vector<2x96xf32> -> vector<2x96xf32>
    %253 = vector.extract_strided_slice %252 {offsets = [0, 48], sizes = [2, 48], strides = [1, 1]} : vector<2x96xf32> to vector<2x48xf32>
    %254 = vector.broadcast %3 : vector<1x48xf32> to vector<2x48xf32>
    %255 = arith.addf %253, %254 : vector<2x48xf32>
    %256 = arith.negf %255 : vector<2x48xf32>
    %257 = math.exp %256 : vector<2x48xf32>
    %cst_29 = arith.constant 1.000000e+00 : f32
    %258 = vector.broadcast %cst_29 : f32 to vector<2x48xf32>
    %259 = arith.addf %258, %257 : vector<2x48xf32>
    %260 = arith.divf %258, %259 : vector<2x48xf32>
    %261 = math.tanh %255 : vector<2x48xf32>
    %262 = vector.extract_strided_slice %260 {offsets = [0, 0], sizes = [2, 12], strides = [1, 1]} : vector<2x48xf32> to vector<2x12xf32>
    %263 = vector.extract_strided_slice %260 {offsets = [0, 12], sizes = [2, 12], strides = [1, 1]} : vector<2x48xf32> to vector<2x12xf32>
    %264 = vector.extract_strided_slice %261 {offsets = [0, 24], sizes = [2, 12], strides = [1, 1]} : vector<2x48xf32> to vector<2x12xf32>
    %265 = vector.extract_strided_slice %260 {offsets = [0, 36], sizes = [2, 12], strides = [1, 1]} : vector<2x48xf32> to vector<2x12xf32>
    %266 = arith.mulf %263, %223 : vector<2x12xf32>
    %267 = arith.mulf %262, %264 : vector<2x12xf32>
    %268 = arith.addf %266, %267 : vector<2x12xf32>
    %269 = math.tanh %268 : vector<2x12xf32>
    %270 = arith.mulf %265, %269 : vector<2x12xf32>
    %c5_i32 = arith.constant 5 : i32
    %271 = vector.broadcast %c5_i32 : i32 to vector<2x1xi32>
    %272 = arith.cmpi eq, %4, %271 : vector<2x1xi32>
    %273 = arith.extui %272 : vector<2x1xi1> to vector<2x1xi32>
    %274 = arith.sitofp %273 : vector<2x1xi32> to vector<2x1xf32>
    %275 = vector.broadcast %274 : vector<2x1xf32> to vector<2x12xf32>
    %276 = arith.mulf %275, %270 : vector<2x12xf32>
    %277 = arith.addf %232, %276 : vector<2x12xf32>
    %278 = vector.extract_strided_slice %8 {offsets = [12, 0], sizes = [2, 48], strides = [1, 1]} : vector<16x48xf32> to vector<2x48xf32>
    %279 = vector.extract_strided_slice %252 {offsets = [0, 0], sizes = [2, 48], strides = [1, 1]} : vector<2x96xf32> to vector<2x48xf32>
    %280 = arith.addf %278, %279 : vector<2x48xf32>
    %281 = arith.negf %280 : vector<2x48xf32>
    %282 = math.exp %281 : vector<2x48xf32>
    %cst_30 = arith.constant 1.000000e+00 : f32
    %283 = vector.broadcast %cst_30 : f32 to vector<2x48xf32>
    %284 = arith.addf %283, %282 : vector<2x48xf32>
    %285 = arith.divf %283, %284 : vector<2x48xf32>
    %286 = math.tanh %280 : vector<2x48xf32>
    %287 = vector.extract_strided_slice %285 {offsets = [0, 0], sizes = [2, 12], strides = [1, 1]} : vector<2x48xf32> to vector<2x12xf32>
    %288 = vector.extract_strided_slice %285 {offsets = [0, 12], sizes = [2, 12], strides = [1, 1]} : vector<2x48xf32> to vector<2x12xf32>
    %289 = vector.extract_strided_slice %286 {offsets = [0, 24], sizes = [2, 12], strides = [1, 1]} : vector<2x48xf32> to vector<2x12xf32>
    %290 = vector.extract_strided_slice %285 {offsets = [0, 36], sizes = [2, 12], strides = [1, 1]} : vector<2x48xf32> to vector<2x12xf32>
    %291 = arith.mulf %288, %248 : vector<2x12xf32>
    %292 = arith.mulf %287, %289 : vector<2x12xf32>
    %293 = arith.addf %291, %292 : vector<2x12xf32>
    %294 = math.tanh %293 : vector<2x12xf32>
    %295 = arith.mulf %290, %294 : vector<2x12xf32>
    %296 = tpu.concatenate %295, %270 in 1 : vector<2x12xf32>, vector<2x12xf32> -> vector<2x24xf32>
    %cst_31 = arith.constant dense<0.000000e+00> : vector<2x96xf32>
    %297 = tpu.matmul %296, %2, %cst_31 {dimension_numbers = #tpu.dot_dimension_numbers<[1], [0], [0], [1], [0, 0, 1, 1], [], []>} : vector<2x24xf32>, vector<24x96xf32>, vector<2x96xf32> -> vector<2x96xf32>
    %298 = vector.extract_strided_slice %297 {offsets = [0, 48], sizes = [2, 48], strides = [1, 1]} : vector<2x96xf32> to vector<2x48xf32>
    %299 = vector.broadcast %3 : vector<1x48xf32> to vector<2x48xf32>
    %300 = arith.addf %298, %299 : vector<2x48xf32>
    %301 = arith.negf %300 : vector<2x48xf32>
    %302 = math.exp %301 : vector<2x48xf32>
    %cst_32 = arith.constant 1.000000e+00 : f32
    %303 = vector.broadcast %cst_32 : f32 to vector<2x48xf32>
    %304 = arith.addf %303, %302 : vector<2x48xf32>
    %305 = arith.divf %303, %304 : vector<2x48xf32>
    %306 = math.tanh %300 : vector<2x48xf32>
    %307 = vector.extract_strided_slice %305 {offsets = [0, 0], sizes = [2, 12], strides = [1, 1]} : vector<2x48xf32> to vector<2x12xf32>
    %308 = vector.extract_strided_slice %305 {offsets = [0, 12], sizes = [2, 12], strides = [1, 1]} : vector<2x48xf32> to vector<2x12xf32>
    %309 = vector.extract_strided_slice %306 {offsets = [0, 24], sizes = [2, 12], strides = [1, 1]} : vector<2x48xf32> to vector<2x12xf32>
    %310 = vector.extract_strided_slice %305 {offsets = [0, 36], sizes = [2, 12], strides = [1, 1]} : vector<2x48xf32> to vector<2x12xf32>
    %311 = arith.mulf %308, %268 : vector<2x12xf32>
    %312 = arith.mulf %307, %309 : vector<2x12xf32>
    %313 = arith.addf %311, %312 : vector<2x12xf32>
    %314 = math.tanh %313 : vector<2x12xf32>
    %315 = arith.mulf %310, %314 : vector<2x12xf32>
    %c6_i32 = arith.constant 6 : i32
    %316 = vector.broadcast %c6_i32 : i32 to vector<2x1xi32>
    %317 = arith.cmpi eq, %4, %316 : vector<2x1xi32>
    %318 = arith.extui %317 : vector<2x1xi1> to vector<2x1xi32>
    %319 = arith.sitofp %318 : vector<2x1xi32> to vector<2x1xf32>
    %320 = vector.broadcast %319 : vector<2x1xf32> to vector<2x12xf32>
    %321 = arith.mulf %320, %315 : vector<2x12xf32>
    %322 = arith.addf %277, %321 : vector<2x12xf32>
    %323 = vector.extract_strided_slice %8 {offsets = [14, 0], sizes = [2, 48], strides = [1, 1]} : vector<16x48xf32> to vector<2x48xf32>
    %324 = vector.extract_strided_slice %297 {offsets = [0, 0], sizes = [2, 48], strides = [1, 1]} : vector<2x96xf32> to vector<2x48xf32>
    %325 = arith.addf %323, %324 : vector<2x48xf32>
    %326 = arith.negf %325 : vector<2x48xf32>
    %327 = math.exp %326 : vector<2x48xf32>
    %cst_33 = arith.constant 1.000000e+00 : f32
    %328 = vector.broadcast %cst_33 : f32 to vector<2x48xf32>
    %329 = arith.addf %328, %327 : vector<2x48xf32>
    %330 = arith.divf %328, %329 : vector<2x48xf32>
    %331 = math.tanh %325 : vector<2x48xf32>
    %332 = vector.extract_strided_slice %330 {offsets = [0, 0], sizes = [2, 12], strides = [1, 1]} : vector<2x48xf32> to vector<2x12xf32>
    %333 = vector.extract_strided_slice %330 {offsets = [0, 12], sizes = [2, 12], strides = [1, 1]} : vector<2x48xf32> to vector<2x12xf32>
    %334 = vector.extract_strided_slice %331 {offsets = [0, 24], sizes = [2, 12], strides = [1, 1]} : vector<2x48xf32> to vector<2x12xf32>
    %335 = vector.extract_strided_slice %330 {offsets = [0, 36], sizes = [2, 12], strides = [1, 1]} : vector<2x48xf32> to vector<2x12xf32>
    %336 = arith.mulf %333, %293 : vector<2x12xf32>
    %337 = arith.mulf %332, %334 : vector<2x12xf32>
    %338 = arith.addf %336, %337 : vector<2x12xf32>
    %339 = math.tanh %338 : vector<2x12xf32>
    %340 = arith.mulf %335, %339 : vector<2x12xf32>
    %341 = tpu.concatenate %340, %315 in 1 : vector<2x12xf32>, vector<2x12xf32> -> vector<2x24xf32>
    %cst_34 = arith.constant dense<0.000000e+00> : vector<2x96xf32>
    %342 = tpu.matmul %341, %2, %cst_34 {dimension_numbers = #tpu.dot_dimension_numbers<[1], [0], [0], [1], [0, 0, 1, 1], [], []>} : vector<2x24xf32>, vector<24x96xf32>, vector<2x96xf32> -> vector<2x96xf32>
    %343 = vector.extract_strided_slice %342 {offsets = [0, 48], sizes = [2, 48], strides = [1, 1]} : vector<2x96xf32> to vector<2x48xf32>
    %344 = vector.broadcast %3 : vector<1x48xf32> to vector<2x48xf32>
    %345 = arith.addf %343, %344 : vector<2x48xf32>
    %346 = arith.negf %345 : vector<2x48xf32>
    %347 = math.exp %346 : vector<2x48xf32>
    %cst_35 = arith.constant 1.000000e+00 : f32
    %348 = vector.broadcast %cst_35 : f32 to vector<2x48xf32>
    %349 = arith.addf %348, %347 : vector<2x48xf32>
    %350 = arith.divf %348, %349 : vector<2x48xf32>
    %351 = math.tanh %345 : vector<2x48xf32>
    %352 = vector.extract_strided_slice %350 {offsets = [0, 0], sizes = [2, 12], strides = [1, 1]} : vector<2x48xf32> to vector<2x12xf32>
    %353 = vector.extract_strided_slice %350 {offsets = [0, 12], sizes = [2, 12], strides = [1, 1]} : vector<2x48xf32> to vector<2x12xf32>
    %354 = vector.extract_strided_slice %351 {offsets = [0, 24], sizes = [2, 12], strides = [1, 1]} : vector<2x48xf32> to vector<2x12xf32>
    %355 = vector.extract_strided_slice %350 {offsets = [0, 36], sizes = [2, 12], strides = [1, 1]} : vector<2x48xf32> to vector<2x12xf32>
    %356 = arith.mulf %353, %313 : vector<2x12xf32>
    %357 = arith.mulf %352, %354 : vector<2x12xf32>
    %358 = arith.addf %356, %357 : vector<2x12xf32>
    %359 = math.tanh %358 : vector<2x12xf32>
    %360 = arith.mulf %355, %359 : vector<2x12xf32>
    %c7_i32 = arith.constant 7 : i32
    %361 = vector.broadcast %c7_i32 : i32 to vector<2x1xi32>
    %362 = arith.cmpi eq, %4, %361 : vector<2x1xi32>
    %363 = arith.extui %362 : vector<2x1xi1> to vector<2x1xi32>
    %364 = arith.sitofp %363 : vector<2x1xi32> to vector<2x1xf32>
    %365 = vector.broadcast %364 : vector<2x1xf32> to vector<2x12xf32>
    %366 = arith.mulf %365, %360 : vector<2x12xf32>
    %367 = arith.addf %322, %366 : vector<2x12xf32>
    %c0_36 = arith.constant 0 : index
    %c0_37 = arith.constant 0 : index
    %368 = vector.load %arg9[%c0_36, %c0_37] : memref<2x12xf32, #tpu.memory_space<vmem>>, vector<2x12xf32>
    tpu.vector_store %arg9[%c0_36, %c0_37], %367 {strides = array<i32>} : memref<2x12xf32, #tpu.memory_space<vmem>>, vector<2x12xf32>,
    %c0_38 = arith.constant 0 : index
    %c0_39 = arith.constant 0 : index
    %369 = vector.load %arg6[%c0_38, %c0_39] : memref<12x2xf32, #tpu.memory_space<vmem>>, vector<12x2xf32>
    %cst_40 = arith.constant dense<0.000000e+00> : vector<2x2xf32>
    %370 = tpu.matmul %367, %369, %cst_40 {dimension_numbers = #tpu.dot_dimension_numbers<[1], [0], [0], [1], [0, 0, 1, 1], [], []>} : vector<2x12xf32>, vector<12x2xf32>, vector<2x2xf32> -> vector<2x2xf32>
    %c0_41 = arith.constant 0 : index
    %c0_42 = arith.constant 0 : index
    %371 = vector.load %arg7[%c0_41, %c0_42] : memref<1x2xf32, #tpu.memory_space<vmem>>, vector<1x2xf32>
    %372 = vector.broadcast %371 : vector<1x2xf32> to vector<2x2xf32>
    %373 = arith.addf %370, %372 : vector<2x2xf32>
    %c0_43 = arith.constant 0 : index
    %c0_44 = arith.constant 0 : index
    %374 = vector.load %arg8[%c0_43, %c0_44] : memref<2x2xf32, #tpu.memory_space<vmem>>, vector<2x2xf32>
    tpu.vector_store %arg8[%c0_43, %c0_44], %373 {strides = array<i32>} : memref<2x2xf32, #tpu.memory_space<vmem>>, vector<2x2xf32>,
    return
  }
}

</mosaic_0001>

<llo_original>
// kernel: tpu_custom_call.1
$region0: #{tpu_custom_call.1}
  #allocation0 [shape = 'u32[]', space=smem, size = 0x4, offset = 0x4, fixed_abs, tag = 'smem constant byte address 0x4 - core index']
  #allocation1 [shape = 'u32[144,128]{1,0:T(1,128)}', space=vmem, size = 0x12000, scoped, tag = 'internal scratch']
  %s0 = inlined_call_operand.vmem [shape: f32[16,4], index: 0, kind: input, shape index: {}]
  %s1 = inlined_call_operand.vmem [shape: s32[2,1], index: 1, kind: input, shape index: {}]
  %s2 = inlined_call_operand.vmem [shape: f32[4,48], index: 2, kind: input, shape index: {}]
  %s3 = inlined_call_operand.vmem [shape: f32[1,48], index: 3, kind: input, shape index: {}]
  %s4 = inlined_call_operand.vmem [shape: f32[24,96], index: 4, kind: input, shape index: {}]
  %s5 = inlined_call_operand.vmem [shape: f32[1,48], index: 5, kind: input, shape index: {}]
  %s6 = inlined_call_operand.vmem [shape: f32[12,2], index: 6, kind: input, shape index: {}]
  %s7 = inlined_call_operand.vmem [shape: f32[1,2], index: 7, kind: input, shape index: {}]
  %s8 = inlined_call_operand.hbm [shape: f32[2,2], index: 8, kind: output, shape index: {0}]
  %s9 = inlined_call_operand.hbm [shape: f32[2,12], index: 9, kind: output, shape index: {1}]
  %10 = xla_tuple %s8, %s9
  %s11 = sld [smem:[#allocation0]]
  $region50: #{tpu_custom_call.1} parent=0
    _
  %s13 = ssub.s32 1, %s11
  %s14 = scalar_select 0, %s13, %s11
  $region1: #{tpu_custom_call.1} parent=0
    #allocation2 [shape = 'u8[1024]{0}', space=vmem, size = 0x400, scoped, tag = 'output window, operand 0, single buffered']
    #allocation3 [shape = 's32[1]{0}', space=sflag, size = 0x4, scoped, tag = 'scoped memory for tpu_custom_call.1']
    #allocation4 [shape = 'u8[1024]{0}', space=vmem, size = 0x400, scoped, tag = 'output window, operand 1, single buffered']
    #allocation5 [shape = 's32[1]{0}', space=sflag, size = 0x4, scoped, tag = 'scoped memory for tpu_custom_call.1']
    %15 = vsyncpa [#allocation3], 0
    %16 = vsyncpa [#allocation5], 0
    // Predicated region
    $region2: #{tpu_custom_call.1} parent=1 // pred_check
      _
    $region3: #{tpu_custom_call.1} parent=1 // pred_check_branch
      %18 = sbr.rel (0) target = $region5
    $region4: #{tpu_custom_call.1} parent=1 // pred_region
      _
    $region5: #{tpu_custom_call.1} parent=1 // pred_fallthru
      _
    // Predicated region
    $region6: #{tpu_custom_call.1} parent=1 // pred_check
      _
    $region7: #{tpu_custom_call.1} parent=1 // pred_check_branch
      %20 = sbr.rel (0) target = $region9
    $region8: #{tpu_custom_call.1} parent=1 // pred_region
      _
    $region9: #{tpu_custom_call.1} parent=1 // pred_fallthru
      _
    // Predicated region
    $region10: #{tpu_custom_call.1} parent=1 // pred_check
      _
    $region11: #{tpu_custom_call.1} parent=1 // pred_check_branch
      %22 = sbr.rel (0) target = $region13
    $region12: #{tpu_custom_call.1} parent=1 // pred_region
      _
    $region13: #{tpu_custom_call.1} parent=1 // pred_fallthru
      _
    // Predicated region
    $region14: #{tpu_custom_call.1} parent=1 // pred_check
      _
    $region15: #{tpu_custom_call.1} parent=1 // pred_check_branch
      %24 = sbr.rel (0) target = $region17
    $region16: #{tpu_custom_call.1} parent=1 // pred_region
      _
    $region17: #{tpu_custom_call.1} parent=1 // pred_fallthru
      _
    // Predicated region
    $region18: #{tpu_custom_call.1} parent=1 // pred_check
      _
    $region19: #{tpu_custom_call.1} parent=1 // pred_check_branch
      %26 = sbr.rel (0) target = $region21
    $region20: #{tpu_custom_call.1} parent=1 // pred_region
      _
    $region21: #{tpu_custom_call.1} parent=1 // pred_fallthru
      _
    // Predicated region
    $region22: #{tpu_custom_call.1} parent=1 // pred_check
      _
    $region23: #{tpu_custom_call.1} parent=1 // pred_check_branch
      %28 = sbr.rel (0) target = $region25
    $region24: #{tpu_custom_call.1} parent=1 // pred_region
      _
    $region25: #{tpu_custom_call.1} parent=1 // pred_fallthru
      _
    // Predicated region
    $region26: #{tpu_custom_call.1} parent=1 // pred_check
      _
    $region27: #{tpu_custom_call.1} parent=1 // pred_check_branch
      %30 = sbr.rel (0) target = $region29
    $region28: #{tpu_custom_call.1} parent=1 // pred_region
      _
    $region29: #{tpu_custom_call.1} parent=1 // pred_fallthru
      _
    // Predicated region
    $region30: #{tpu_custom_call.1} parent=1 // pred_check
      _
    $region31: #{tpu_custom_call.1} parent=1 // pred_check_branch
      %32 = sbr.rel (0) target = $region33
    $region32: #{tpu_custom_call.1} parent=1 // pred_region
      _
    $region33: #{tpu_custom_call.1} parent=1 // pred_fallthru
      _
    %v33 = vld [vmem:[%s2] sm:$0xf]
    %v34 = vld [vmem:[%s3] sm:$0x1]
    %v35 = vld [vmem:[%s4] sm:$0xff]
    %v36 = vld [vmem:[%s4 + $0x8] sm:$0xff]
    %v37 = vld [vmem:[%s4 + $0x10] sm:$0xff]
    %v38 = vld [vmem:[%s5] sm:$0x1]
    %v39 = vld [vmem:[%s1] sm:$0x3]
    %v40 = vld [vmem:[%s0] sm:$0xff]
    %v41 = vld [vmem:[%s0 + $0x8] sm:$0xff]
    %v43 = vlaneseq
    %v44 = vshrl.u32 %v43, 7
    %v45 = vsub.s32 0, %v44
    %v46 = vrot.slane %v34, %v45
    %vm48 = vcmask 31744
    %v50 = vsel %vm48, %v40, 0
    %v53 = vsel %vm48, %v41, 0
    %vm55 = vcmask 1043456
    %v57 = vsel %vm55, %v33, 0
    %59 = vmatprep.subr.mxu0 0.0
    %60 = vmatpush1.msra.mxu0 %v57
    %61 = vmatprep.subr.mxu0 0.0
    %62 = vmatpush1.msra.mxu0 0.0
    %63 = vmatprep.subr.mxu0 0.0
    %64 = vmatpush1.msra.mxu0 0.0
    %65 = vmatprep.subr.mxu0 0.0
    %66 = vmatpush1.msra.mxu0 0.0
    %67 = vmatprep.subr.mxu0 0.0
    %68 = vmatpush1.msra.mxu0 0.0
    %69 = vmatprep.subr.mxu0 0.0
    %70 = vmatpush1.msra.mxu0 0.0
    %71 = vmatprep.subr.mxu0 0.0
    %72 = vmatpush1.msra.mxu0 0.0
    %73 = vmatprep.subr.mxu0 0.0
    %74 = vmatpush1.msra.mxu0 0.0
    %75 = vmatprep.subr.mxu0 0.0
    %76 = vmatpush1.msra.mxu0 0.0
    %77 = vmatprep.subr.mxu0 0.0
    %78 = vmatpush1.msra.mxu0 0.0
    %79 = vmatprep.subr.mxu0 0.0
    %80 = vmatpush1.msra.mxu0 0.0
    %81 = vmatprep.subr.mxu0 0.0
    %82 = vmatpush1.msra.mxu0 0.0
    %83 = vmatprep.subr.mxu0 0.0
    %84 = vmatpush1.msra.mxu0 0.0
    %85 = vmatprep.subr.mxu0 0.0
    %86 = vmatpush1.msra.mxu0 0.0
    %87 = vmatprep.subr.mxu0 0.0
    %88 = vmatpush1.msra.mxu0 0.0
    %89 = vmatprep.subr.mxu0 0.0
    %90 = vmatpush1.msra.mxu0 0.0
    %91 = vmatprep.subr.mxu0 0.0
    %92 = vmatpush1.msra.mxu0 0.0
    %93 = vmatprep.subr.mxu0 0.0
    %94 = vmatpush1.msra.mxu0 0.0
    %95 = vmatprep.subr.mxu0 0.0
    %96 = vmatpush1.msra.mxu0 0.0
    %97 = vmatprep.subr.mxu0 0.0
    %98 = vmatpush1.msra.mxu0 0.0
    %99 = vmatprep.subr.mxu0 0.0
    %100 = vmatpush1.msra.mxu0 0.0
    %101 = vmatprep.subr.mxu0 0.0
    %102 = vmatpush1.msra.mxu0 0.0
    %103 = vmatprep.subr.mxu0 0.0
    %104 = vmatpush1.msra.mxu0 0.0
    %105 = vmatprep.subr.mxu0 0.0
    %106 = vmatpush1.msra.mxu0 0.0
    %107 = vmatprep.subr.mxu0 0.0
    %108 = vmatpush1.msra.mxu0 0.0
    %109 = vmatprep.subr.mxu0 0.0
    %110 = vmatpush1.msra.mxu0 0.0
    %111 = vmatprep.subr.mxu0 0.0
    %112 = vmatpush1.msra.mxu0 0.0
    %113 = vmatprep.subr.mxu0 0.0
    %114 = vmatpush1.msra.mxu0 0.0
    %115 = vmatprep.subr.mxu0 0.0
    %116 = vmatpush1.msra.mxu0 0.0
    %117 = vmatprep.subr.mxu0 0.0
    %118 = vmatpush1.msra.mxu0 0.0
    %119 = vmatprep.subr.mxu0 0.0
    %120 = vmatpush1.msra.mxu0 0.0
    %121 = vmatprep.subr.mxu0 0.0
    %122 = vmatpush1.msra.mxu0 0.0
    %123 = vmatprep.mubr.f32.mxu0 0.0
    %124 = vmatmul.mubr.f32.gmra.mrb[0].mxu0 %v50
    %v125 = vpop.f32.mrb[0].mxu0
    %v126 = vadd.f32 %v46, %v125
    %v127 = vpop.f32.mrb[0].mxu0
    %128 = vmatprep.mubr.f32.mxu0 0.0
    %129 = vmatmul.mubr.f32.gmra.mrb[0].mxu0 %v53
    %v130 = vpop.f32.mrb[0].mxu0
    %v131 = vadd.f32 %v46, %v130
    %v132 = vpop.f32.mrb[0].mxu0
    %133 = vdwg.mxu0
    %v134 = vxor.u32 %v126, 2147483648
    %v135 = vmul.f32 %v134, 1.442695
    %v136 = vpow.pop %v135
    %v137 = vadd.f32 %v136, 1.0
    %v138 = vrcp.pop %v137
    %v139 = vmul.f32 1.0, %v138
    %v140 = vtanh.pop %v126
    %v141 = vmul.f32 %v139, 0.0
    %143 = vrot.lane.b32.xlu0 %v140, 104
    %v144 = vpop.permute.xlu0 %143
    %v146 = vmul.f32 %v139, %v144
    %148 = vrot.lane.b32.xlu0 %v146, 12
    %v149 = vpop.permute.xlu0 %148
    %v151 = vadd.f32 %v141, %v149
    %v152 = vtanh.pop %v151
    %154 = vrot.lane.b32.xlu0 %v152, 24
    %v155 = vpop.permute.xlu0 %154
    %v157 = vmul.f32 %v139, %v155
    %159 = vrot.lane.b32.xlu0 %v157, 92
    %v160 = vpop.permute.xlu0 %159
    %vm162 = vcmask 97280
    %v163 = vsel %vm162, %v160, 0.0
    %vm164 = vcmask 195584
    %v166 = vsel %vm164, %v163, 0
    %168 = vmatprep.subr.mxu0 0.0
    %169 = vmatpush1.msra.mxu0 %v35
    %170 = vmatprep.subr.mxu0 0.0
    %171 = vmatpush1.msra.mxu0 %v36
    %172 = vmatprep.subr.mxu0 0.0
    %173 = vmatpush1.msra.mxu0 %v37
    %174 = vmatprep.subr.mxu0 0.0
    %175 = vmatpush1.msra.mxu0 0.0
    %176 = vmatprep.subr.mxu0 0.0
    %177 = vmatpush1.msra.mxu0 0.0
    %178 = vmatprep.subr.mxu0 0.0
    %179 = vmatpush1.msra.mxu0 0.0
    %180 = vmatprep.subr.mxu0 0.0
    %181 = vmatpush1.msra.mxu0 0.0
    %182 = vmatprep.subr.mxu0 0.0
    %183 = vmatpush1.msra.mxu0 0.0
    %184 = vmatprep.subr.mxu0 0.0
    %185 = vmatpush1.msra.mxu0 0.0
    %186 = vmatprep.subr.mxu0 0.0
    %187 = vmatpush1.msra.mxu0 0.0
    %188 = vmatprep.subr.mxu0 0.0
    %189 = vmatpush1.msra.mxu0 0.0
    %190 = vmatprep.subr.mxu0 0.0
    %191 = vmatpush1.msra.mxu0 0.0
    %192 = vmatprep.subr.mxu0 0.0
    %193 = vmatpush1.msra.mxu0 0.0
    %194 = vmatprep.subr.mxu0 0.0
    %195 = vmatpush1.msra.mxu0 0.0
    %196 = vmatprep.subr.mxu0 0.0
    %197 = vmatpush1.msra.mxu0 0.0
    %198 = vmatprep.subr.mxu0 0.0
    %199 = vmatpush1.msra.mxu0 0.0
    %200 = vmatprep.subr.mxu0 0.0
    %201 = vmatpush1.msra.mxu0 0.0
    %202 = vmatprep.subr.mxu0 0.0
    %203 = vmatpush1.msra.mxu0 0.0
    %204 = vmatprep.subr.mxu0 0.0
    %205 = vmatpush1.msra.mxu0 0.0
    %206 = vmatprep.subr.mxu0 0.0
    %207 = vmatpush1.msra.mxu0 0.0
    %208 = vmatprep.subr.mxu0 0.0
    %209 = vmatpush1.msra.mxu0 0.0
    %210 = vmatprep.subr.mxu0 0.0
    %211 = vmatpush1.msra.mxu0 0.0
    %212 = vmatprep.subr.mxu0 0.0
    %213 = vmatpush1.msra.mxu0 0.0
    %214 = vmatprep.subr.mxu0 0.0
    %215 = vmatpush1.msra.mxu0 0.0
    %216 = vmatprep.subr.mxu0 0.0
    %217 = vmatpush1.msra.mxu0 0.0
    %218 = vmatprep.subr.mxu0 0.0
    %219 = vmatpush1.msra.mxu0 0.0
    %220 = vmatprep.subr.mxu0 0.0
    %221 = vmatpush1.msra.mxu0 0.0
    %222 = vmatprep.subr.mxu0 0.0
    %223 = vmatpush1.msra.mxu0 0.0
    %224 = vmatprep.subr.mxu0 0.0
    %225 = vmatpush1.msra.mxu0 0.0
    %226 = vmatprep.subr.mxu0 0.0
    %227 = vmatpush1.msra.mxu0 0.0
    %228 = vmatprep.subr.mxu0 0.0
    %229 = vmatpush1.msra.mxu0 0.0
    %230 = vmatprep.subr.mxu0 0.0
    %231 = vmatpush1.msra.mxu0 0.0
    %232 = vmatprep.mubr.f32.mxu0 0.0
    %233 = vmatmul.mubr.f32.gmra.mrb[0].mxu0 %v166
    %v234 = vpop.f32.mrb[0].mxu0
    %v235 = vadd.f32 0.0, %v234
    %v236 = vpop.f32.mrb[0].mxu0
    %237 = vdwg.mxu0
    %v239 = vlaneseq
    %v240 = vshrl.u32 %v239, 7
    %v241 = vsub.s32 0, %v240
    %v242 = vrot.slane %v38, %v241
    %243 = vrot.lane.b32.xlu0 %v242, 48
    %v244 = vpop.permute.xlu0 %243
    %v246 = vadd.f32 %v235, %v244
    %v247 = vxor.u32 %v246, 2147483648
    %v248 = vmul.f32 %v247, 1.442695
    %v249 = vpow.pop %v248
    %v250 = vadd.f32 %v249, 1.0
    %v251 = vrcp.pop %v250
    %v252 = vmul.f32 1.0, %v251
    %v253 = vtanh.pop %v246
    %v254 = vmul.f32 %v252, 0.0
    %256 = vrot.lane.b32.xlu0 %v253, 104
    %v257 = vpop.permute.xlu0 %256
    %v259 = vmul.f32 %v252, %v257
    %261 = vrot.lane.b32.xlu0 %v259, 12
    %v262 = vpop.permute.xlu0 %261
    %v264 = vadd.f32 %v254, %v262
    %v265 = vtanh.pop %v264
    %267 = vrot.lane.b32.xlu0 %v265, 24
    %v268 = vpop.permute.xlu0 %267
    %v270 = vmul.f32 %v252, %v268
    %vm271 = vcmp.eq.s32.totalorder %v39, 0
    %v272 = vsel %vm271, 1, 0
    %v273 = vcvt.s32.f32 %v272
    %275 = vset.pattern.permute.xlu0 0
    %276 = vperm.xlu0 %275, %v273
    %v277 = vpop.permute.xlu0 %276
    %v279 = vmul.f32 %v277, %v270
    %v280 = vadd.f32 %v279, 0.0
    %v282 = vrot.slane %v235, 6
    %v284 = vadd.f32 %v126, %v282
    %v285 = vxor.u32 %v284, 2147483648
    %v286 = vmul.f32 %v285, 1.442695
    %v287 = vpow.pop %v286
    %v288 = vadd.f32 %v287, 1.0
    %v289 = vrcp.pop %v288
    %v290 = vmul.f32 1.0, %v289
    %v291 = vtanh.pop %v284
    %v293 = vrot.slane %v151, 6
    %v295 = vmul.f32 %v290, %v293
    %297 = vrot.lane.b32.xlu0 %v291, 104
    %v298 = vpop.permute.xlu0 %297
    %v300 = vmul.f32 %v290, %v298
    %302 = vrot.lane.b32.xlu0 %v300, 12
    %v303 = vpop.permute.xlu0 %302
    %v305 = vadd.f32 %v295, %v303
    %v306 = vtanh.pop %v305
    %308 = vrot.lane.b32.xlu0 %v306, 24
    %v309 = vpop.permute.xlu0 %308
    %v311 = vmul.f32 %v290, %v309
    %313 = vrot.lane.b32.xlu0 %v311, 92
    %v314 = vpop.permute.xlu0 %313
    %v317 = vrot.slane %v270, 6
    %318 = vrot.lane.b32.xlu0 %v317, 56
    %v319 = vpop.permute.xlu0 %318
    %v321 = vsel %vm162, %v314, %v319
    %v323 = vrot.slane %v321, 2
    %v324 = vsel %vm164, %v323, 0
    %326 = vmatprep.subr.mxu0 0.0
    %327 = vmatpush1.msra.mxu0 %v35
    %328 = vmatprep.subr.mxu0 0.0
    %329 = vmatpush1.msra.mxu0 %v36
    %330 = vmatprep.subr.mxu0 0.0
    %331 = vmatpush1.msra.mxu0 %v37
    %332 = vmatprep.subr.mxu0 0.0
    %333 = vmatpush1.msra.mxu0 0.0
    %334 = vmatprep.subr.mxu0 0.0
    %335 = vmatpush1.msra.mxu0 0.0
    %336 = vmatprep.subr.mxu0 0.0
    %337 = vmatpush1.msra.mxu0 0.0
    %338 = vmatprep.subr.mxu0 0.0
    %339 = vmatpush1.msra.mxu0 0.0
    %340 = vmatprep.subr.mxu0 0.0
    %341 = vmatpush1.msra.mxu0 0.0
    %342 = vmatprep.subr.mxu0 0.0
    %343 = vmatpush1.msra.mxu0 0.0
    %344 = vmatprep.subr.mxu0 0.0
    %345 = vmatpush1.msra.mxu0 0.0
    %346 = vmatprep.subr.mxu0 0.0
    %347 = vmatpush1.msra.mxu0 0.0
    %348 = vmatprep.subr.mxu0 0.0
    %349 = vmatpush1.msra.mxu0 0.0
    %350 = vmatprep.subr.mxu0 0.0
    %351 = vmatpush1.msra.mxu0 0.0
    %352 = vmatprep.subr.mxu0 0.0
    %353 = vmatpush1.msra.mxu0 0.0
    %354 = vmatprep.subr.mxu0 0.0
    %355 = vmatpush1.msra.mxu0 0.0
    %356 = vmatprep.subr.mxu0 0.0
    %357 = vmatpush1.msra.mxu0 0.0
    %358 = vmatprep.subr.mxu0 0.0
    %359 = vmatpush1.msra.mxu0 0.0
    %360 = vmatprep.subr.mxu0 0.0
    %361 = vmatpush1.msra.mxu0 0.0
    %362 = vmatprep.subr.mxu0 0.0
    %363 = vmatpush1.msra.mxu0 0.0
    %364 = vmatprep.subr.mxu0 0.0
    %365 = vmatpush1.msra.mxu0 0.0
    %366 = vmatprep.subr.mxu0 0.0
    %367 = vmatpush1.msra.mxu0 0.0
    %368 = vmatprep.subr.mxu0 0.0
    %369 = vmatpush1.msra.mxu0 0.0
    %370 = vmatprep.subr.mxu0 0.0
    %371 = vmatpush1.msra.mxu0 0.0
    %372 = vmatprep.subr.mxu0 0.0
    %373 = vmatpush1.msra.mxu0 0.0
    %374 = vmatprep.subr.mxu0 0.0
    %375 = vmatpush1.msra.mxu0 0.0
    %376 = vmatprep.subr.mxu0 0.0
    %377 = vmatpush1.msra.mxu0 0.0
    %378 = vmatprep.subr.mxu0 0.0
    %379 = vmatpush1.msra.mxu0 0.0
    %380 = vmatprep.subr.mxu0 0.0
    %381 = vmatpush1.msra.mxu0 0.0
    %382 = vmatprep.subr.mxu0 0.0
    %383 = vmatpush1.msra.mxu0 0.0
    %384 = vmatprep.subr.mxu0 0.0
    %385 = vmatpush1.msra.mxu0 0.0
    %386 = vmatprep.subr.mxu0 0.0
    %387 = vmatpush1.msra.mxu0 0.0
    %388 = vmatprep.subr.mxu0 0.0
    %389 = vmatpush1.msra.mxu0 0.0
    %390 = vmatprep.mubr.f32.mxu0 0.0
    %391 = vmatmul.mubr.f32.gmra.mrb[0].mxu0 %v324
    %v392 = vpop.f32.mrb[0].mxu0
    %v393 = vadd.f32 0.0, %v392
    %v394 = vpop.f32.mrb[0].mxu0
    %395 = vdwg.mxu0
    %v396 = vadd.f32 %v393, %v244
    %v397 = vxor.u32 %v396, 2147483648
    %v398 = vmul.f32 %v397, 1.442695
    %v399 = vpow.pop %v398
    %v400 = vadd.f32 %v399, 1.0
    %v401 = vrcp.pop %v400
    %v402 = vmul.f32 1.0, %v401
    %v403 = vtanh.pop %v396
    %v404 = vmul.f32 %v402, %v264
    %406 = vrot.lane.b32.xlu0 %v403, 104
    %v407 = vpop.permute.xlu0 %406
    %v409 = vmul.f32 %v402, %v407
    %411 = vrot.lane.b32.xlu0 %v409, 12
    %v412 = vpop.permute.xlu0 %411
    %v414 = vadd.f32 %v404, %v412
    %v415 = vtanh.pop %v414
    %417 = vrot.lane.b32.xlu0 %v415, 24
    %v418 = vpop.permute.xlu0 %417
    %v420 = vmul.f32 %v402, %v418
    %vm421 = vcmp.eq.s32.totalorder %v39, 1
    %v422 = vsel %vm421, 1, 0
    %v423 = vcvt.s32.f32 %v422
    %425 = vset.pattern.permute.xlu0 0
    %426 = vperm.xlu0 %425, %v423
    %v427 = vpop.permute.xlu0 %426
    %v429 = vmul.f32 %v427, %v420
    %v430 = vadd.f32 %v280, %v429
    %v432 = vrot.slane %v393, 4
    %v434 = vadd.f32 %v126, %v432
    %v435 = vxor.u32 %v434, 2147483648
    %v436 = vmul.f32 %v435, 1.442695
    %v437 = vpow.pop %v436
    %v438 = vadd.f32 %v437, 1.0
    %v439 = vrcp.pop %v438
    %v440 = vmul.f32 1.0, %v439
    %v441 = vtanh.pop %v434
    %v443 = vrot.slane %v305, 6
    %v445 = vmul.f32 %v440, %v443
    %447 = vrot.lane.b32.xlu0 %v441, 104
    %v448 = vpop.permute.xlu0 %447
    %v450 = vmul.f32 %v440, %v448
    %452 = vrot.lane.b32.xlu0 %v450, 12
    %v453 = vpop.permute.xlu0 %452
    %v455 = vadd.f32 %v445, %v453
    %v456 = vtanh.pop %v455
    %458 = vrot.lane.b32.xlu0 %v456, 24
    %v459 = vpop.permute.xlu0 %458
    %v461 = vmul.f32 %v440, %v459
    %463 = vrot.lane.b32.xlu0 %v461, 92
    %v464 = vpop.permute.xlu0 %463
    %v467 = vrot.slane %v420, 4
    %468 = vrot.lane.b32.xlu0 %v467, 56
    %v469 = vpop.permute.xlu0 %468
    %v471 = vsel %vm162, %v464, %v469
    %v473 = vrot.slane %v471, 4
    %v474 = vsel %vm164, %v473, 0
    %476 = vmatprep.subr.mxu0 0.0
    %477 = vmatpush1.msra.mxu0 %v35
    %478 = vmatprep.subr.mxu0 0.0
    %479 = vmatpush1.msra.mxu0 %v36
    %480 = vmatprep.subr.mxu0 0.0
    %481 = vmatpush1.msra.mxu0 %v37
    %482 = vmatprep.subr.mxu0 0.0
    %483 = vmatpush1.msra.mxu0 0.0
    %484 = vmatprep.subr.mxu0 0.0
    %485 = vmatpush1.msra.mxu0 0.0
    %486 = vmatprep.subr.mxu0 0.0
    %487 = vmatpush1.msra.mxu0 0.0
    %488 = vmatprep.subr.mxu0 0.0
    %489 = vmatpush1.msra.mxu0 0.0
    %490 = vmatprep.subr.mxu0 0.0
    %491 = vmatpush1.msra.mxu0 0.0
    %492 = vmatprep.subr.mxu0 0.0
    %493 = vmatpush1.msra.mxu0 0.0
    %494 = vmatprep.subr.mxu0 0.0
    %495 = vmatpush1.msra.mxu0 0.0
    %496 = vmatprep.subr.mxu0 0.0
    %497 = vmatpush1.msra.mxu0 0.0
    %498 = vmatprep.subr.mxu0 0.0
    %499 = vmatpush1.msra.mxu0 0.0
    %500 = vmatprep.subr.mxu0 0.0
    %501 = vmatpush1.msra.mxu0 0.0
    %502 = vmatprep.subr.mxu0 0.0
    %503 = vmatpush1.msra.mxu0 0.0
    %504 = vmatprep.subr.mxu0 0.0
    %505 = vmatpush1.msra.mxu0 0.0
    %506 = vmatprep.subr.mxu0 0.0
    %507 = vmatpush1.msra.mxu0 0.0
    %508 = vmatprep.subr.mxu0 0.0
    %509 = vmatpush1.msra.mxu0 0.0
    %510 = vmatprep.subr.mxu0 0.0
    %511 = vmatpush1.msra.mxu0 0.0
    %512 = vmatprep.subr.mxu0 0.0
    %513 = vmatpush1.msra.mxu0 0.0
    %514 = vmatprep.subr.mxu0 0.0
    %515 = vmatpush1.msra.mxu0 0.0
    %516 = vmatprep.subr.mxu0 0.0
    %517 = vmatpush1.msra.mxu0 0.0
    %518 = vmatprep.subr.mxu0 0.0
    %519 = vmatpush1.msra.mxu0 0.0
    %520 = vmatprep.subr.mxu0 0.0
    %521 = vmatpush1.msra.mxu0 0.0
    %522 = vmatprep.subr.mxu0 0.0
    %523 = vmatpush1.msra.mxu0 0.0
    %524 = vmatprep.subr.mxu0 0.0
    %525 = vmatpush1.msra.mxu0 0.0
    %526 = vmatprep.subr.mxu0 0.0
    %527 = vmatpush1.msra.mxu0 0.0
    %528 = vmatprep.subr.mxu0 0.0
    %529 = vmatpush1.msra.mxu0 0.0
    %530 = vmatprep.subr.mxu0 0.0
    %531 = vmatpush1.msra.mxu0 0.0
    %532 = vmatprep.subr.mxu0 0.0
    %533 = vmatpush1.msra.mxu0 0.0
    %534 = vmatprep.subr.mxu0 0.0
    %535 = vmatpush1.msra.mxu0 0.0
    %536 = vmatprep.subr.mxu0 0.0
    %537 = vmatpush1.msra.mxu0 0.0
    %538 = vmatprep.subr.mxu0 0.0
    %539 = vmatpush1.msra.mxu0 0.0
    %540 = vmatprep.mubr.f32.mxu0 0.0
    %541 = vmatmul.mubr.f32.gmra.mrb[0].mxu0 %v474
    %v542 = vpop.f32.mrb[0].mxu0
    %v543 = vadd.f32 0.0, %v542
    %v544 = vpop.f32.mrb[0].mxu0
    %545 = vdwg.mxu0
    %v546 = vadd.f32 %v543, %v244
    %v547 = vxor.u32 %v546, 2147483648
    %v548 = vmul.f32 %v547, 1.442695
    %v549 = vpow.pop %v548
    %v550 = vadd.f32 %v549, 1.0
    %v551 = vrcp.pop %v550
    %v552 = vmul.f32 1.0, %v551
    %v553 = vtanh.pop %v546
    %v554 = vmul.f32 %v552, %v414
    %556 = vrot.lane.b32.xlu0 %v553, 104
    %v557 = vpop.permute.xlu0 %556
    %v559 = vmul.f32 %v552, %v557
    %561 = vrot.lane.b32.xlu0 %v559, 12
    %v562 = vpop.permute.xlu0 %561
    %v564 = vadd.f32 %v554, %v562
    %v565 = vtanh.pop %v564
    %567 = vrot.lane.b32.xlu0 %v565, 24
    %v568 = vpop.permute.xlu0 %567
    %v570 = vmul.f32 %v552, %v568
    %vm571 = vcmp.eq.s32.totalorder %v39, 2
    %v572 = vsel %vm571, 1, 0
    %v573 = vcvt.s32.f32 %v572
    %575 = vset.pattern.permute.xlu0 0
    %576 = vperm.xlu0 %575, %v573
    %v577 = vpop.permute.xlu0 %576
    %v579 = vmul.f32 %v577, %v570
    %v580 = vadd.f32 %v430, %v579
    %v582 = vrot.slane %v543, 2
    %v584 = vadd.f32 %v126, %v582
    %v585 = vxor.u32 %v584, 2147483648
    %v586 = vmul.f32 %v585, 1.442695
    %v587 = vpow.pop %v586
    %v588 = vadd.f32 %v587, 1.0
    %v589 = vrcp.pop %v588
    %v590 = vmul.f32 1.0, %v589
    %v591 = vtanh.pop %v584
    %v593 = vrot.slane %v455, 6
    %v595 = vmul.f32 %v590, %v593
    %597 = vrot.lane.b32.xlu0 %v591, 104
    %v598 = vpop.permute.xlu0 %597
    %v600 = vmul.f32 %v590, %v598
    %602 = vrot.lane.b32.xlu0 %v600, 12
    %v603 = vpop.permute.xlu0 %602
    %v605 = vadd.f32 %v595, %v603
    %v606 = vtanh.pop %v605
    %608 = vrot.lane.b32.xlu0 %v606, 24
    %v609 = vpop.permute.xlu0 %608
    %v611 = vmul.f32 %v590, %v609
    %613 = vrot.lane.b32.xlu0 %v611, 92
    %v614 = vpop.permute.xlu0 %613
    %v617 = vrot.slane %v570, 2
    %618 = vrot.lane.b32.xlu0 %v617, 56
    %v619 = vpop.permute.xlu0 %618
    %v621 = vsel %vm162, %v614, %v619
    %v623 = vrot.slane %v621, 6
    %v624 = vsel %vm164, %v623, 0
    %626 = vmatprep.subr.mxu0 0.0
    %627 = vmatpush1.msra.mxu0 %v35
    %628 = vmatprep.subr.mxu0 0.0
    %629 = vmatpush1.msra.mxu0 %v36
    %630 = vmatprep.subr.mxu0 0.0
    %631 = vmatpush1.msra.mxu0 %v37
    %632 = vmatprep.subr.mxu0 0.0
    %633 = vmatpush1.msra.mxu0 0.0
    %634 = vmatprep.subr.mxu0 0.0
    %635 = vmatpush1.msra.mxu0 0.0
    %636 = vmatprep.subr.mxu0 0.0
    %637 = vmatpush1.msra.mxu0 0.0
    %638 = vmatprep.subr.mxu0 0.0
    %639 = vmatpush1.msra.mxu0 0.0
    %640 = vmatprep.subr.mxu0 0.0
    %641 = vmatpush1.msra.mxu0 0.0
    %642 = vmatprep.subr.mxu0 0.0
    %643 = vmatpush1.msra.mxu0 0.0
    %644 = vmatprep.subr.mxu0 0.0
    %645 = vmatpush1.msra.mxu0 0.0
    %646 = vmatprep.subr.mxu0 0.0
    %647 = vmatpush1.msra.mxu0 0.0
    %648 = vmatprep.subr.mxu0 0.0
    %649 = vmatpush1.msra.mxu0 0.0
    %650 = vmatprep.subr.mxu0 0.0
    %651 = vmatpush1.msra.mxu0 0.0
    %652 = vmatprep.subr.mxu0 0.0
    %653 = vmatpush1.msra.mxu0 0.0
    %654 = vmatprep.subr.mxu0 0.0
    %655 = vmatpush1.msra.mxu0 0.0
    %656 = vmatprep.subr.mxu0 0.0
    %657 = vmatpush1.msra.mxu0 0.0
    %658 = vmatprep.subr.mxu0 0.0
    %659 = vmatpush1.msra.mxu0 0.0
    %660 = vmatprep.subr.mxu0 0.0
    %661 = vmatpush1.msra.mxu0 0.0
    %662 = vmatprep.subr.mxu0 0.0
    %663 = vmatpush1.msra.mxu0 0.0
    %664 = vmatprep.subr.mxu0 0.0
    %665 = vmatpush1.msra.mxu0 0.0
    %666 = vmatprep.subr.mxu0 0.0
    %667 = vmatpush1.msra.mxu0 0.0
    %668 = vmatprep.subr.mxu0 0.0
    %669 = vmatpush1.msra.mxu0 0.0
    %670 = vmatprep.subr.mxu0 0.0
    %671 = vmatpush1.msra.mxu0 0.0
    %672 = vmatprep.subr.mxu0 0.0
    %673 = vmatpush1.msra.mxu0 0.0
    %674 = vmatprep.subr.mxu0 0.0
    %675 = vmatpush1.msra.mxu0 0.0
    %676 = vmatprep.subr.mxu0 0.0
    %677 = vmatpush1.msra.mxu0 0.0
    %678 = vmatprep.subr.mxu0 0.0
    %679 = vmatpush1.msra.mxu0 0.0
    %680 = vmatprep.subr.mxu0 0.0
    %681 = vmatpush1.msra.mxu0 0.0
    %682 = vmatprep.subr.mxu0 0.0
    %683 = vmatpush1.msra.mxu0 0.0
    %684 = vmatprep.subr.mxu0 0.0
    %685 = vmatpush1.msra.mxu0 0.0
    %686 = vmatprep.subr.mxu0 0.0
    %687 = vmatpush1.msra.mxu0 0.0
    %688 = vmatprep.subr.mxu0 0.0
    %689 = vmatpush1.msra.mxu0 0.0
    %690 = vmatprep.mubr.f32.mxu0 0.0
    %691 = vmatmul.mubr.f32.gmra.mrb[0].mxu0 %v624
    %v692 = vpop.f32.mrb[0].mxu0
    %v693 = vadd.f32 0.0, %v692
    %v694 = vpop.f32.mrb[0].mxu0
    %695 = vdwg.mxu0
    %v696 = vadd.f32 %v693, %v244
    %v697 = vxor.u32 %v696, 2147483648
    %v698 = vmul.f32 %v697, 1.442695
    %v699 = vpow.pop %v698
    %v700 = vadd.f32 %v699, 1.0
    %v701 = vrcp.pop %v700
    %v702 = vmul.f32 1.0, %v701
    %v703 = vtanh.pop %v696
    %v704 = vmul.f32 %v702, %v564
    %706 = vrot.lane.b32.xlu0 %v703, 104
    %v707 = vpop.permute.xlu0 %706
    %v709 = vmul.f32 %v702, %v707
    %711 = vrot.lane.b32.xlu0 %v709, 12
    %v712 = vpop.permute.xlu0 %711
    %v714 = vadd.f32 %v704, %v712
    %v715 = vtanh.pop %v714
    %717 = vrot.lane.b32.xlu0 %v715, 24
    %v718 = vpop.permute.xlu0 %717
    %v720 = vmul.f32 %v702, %v718
    %vm721 = vcmp.eq.s32.totalorder %v39, 3
    %v722 = vsel %vm721, 1, 0
    %v723 = vcvt.s32.f32 %v722
    %725 = vset.pattern.permute.xlu0 0
    %726 = vperm.xlu0 %725, %v723
    %v727 = vpop.permute.xlu0 %726
    %v729 = vmul.f32 %v727, %v720
    %v730 = vadd.f32 %v580, %v729
    %v731 = vadd.f32 %v131, %v693
    %v732 = vxor.u32 %v731, 2147483648
    %v733 = vmul.f32 %v732, 1.442695
    %v734 = vpow.pop %v733
    %v735 = vadd.f32 %v734, 1.0
    %v736 = vrcp.pop %v735
    %v737 = vmul.f32 1.0, %v736
    %v738 = vtanh.pop %v731
    %v740 = vrot.slane %v605, 6
    %v742 = vmul.f32 %v737, %v740
    %744 = vrot.lane.b32.xlu0 %v738, 104
    %v745 = vpop.permute.xlu0 %744
    %v747 = vmul.f32 %v737, %v745
    %749 = vrot.lane.b32.xlu0 %v747, 12
    %v750 = vpop.permute.xlu0 %749
    %v752 = vadd.f32 %v742, %v750
    %v753 = vtanh.pop %v752
    %755 = vrot.lane.b32.xlu0 %v753, 24
    %v756 = vpop.permute.xlu0 %755
    %v758 = vmul.f32 %v737, %v756
    %760 = vrot.lane.b32.xlu0 %v758, 92
    %v761 = vpop.permute.xlu0 %760
    %764 = vrot.lane.b32.xlu0 %v720, 56
    %v765 = vpop.permute.xlu0 %764
    %v767 = vsel %vm162, %v761, %v765
    %v769 = vsel %vm164, %v767, 0
    %771 = vmatprep.subr.mxu0 0.0
    %772 = vmatpush1.msra.mxu0 %v35
    %773 = vmatprep.subr.mxu0 0.0
    %774 = vmatpush1.msra.mxu0 %v36
    %775 = vmatprep.subr.mxu0 0.0
    %776 = vmatpush1.msra.mxu0 %v37
    %777 = vmatprep.subr.mxu0 0.0
    %778 = vmatpush1.msra.mxu0 0.0
    %779 = vmatprep.subr.mxu0 0.0
    %780 = vmatpush1.msra.mxu0 0.0
    %781 = vmatprep.subr.mxu0 0.0
    %782 = vmatpush1.msra.mxu0 0.0
    %783 = vmatprep.subr.mxu0 0.0
    %784 = vmatpush1.msra.mxu0 0.0
    %785 = vmatprep.subr.mxu0 0.0
    %786 = vmatpush1.msra.mxu0 0.0
    %787 = vmatprep.subr.mxu0 0.0
    %788 = vmatpush1.msra.mxu0 0.0
    %789 = vmatprep.subr.mxu0 0.0
    %790 = vmatpush1.msra.mxu0 0.0
    %791 = vmatprep.subr.mxu0 0.0
    %792 = vmatpush1.msra.mxu0 0.0
    %793 = vmatprep.subr.mxu0 0.0
    %794 = vmatpush1.msra.mxu0 0.0
    %795 = vmatprep.subr.mxu0 0.0
    %796 = vmatpush1.msra.mxu0 0.0
    %797 = vmatprep.subr.mxu0 0.0
    %798 = vmatpush1.msra.mxu0 0.0
    %799 = vmatprep.subr.mxu0 0.0
    %800 = vmatpush1.msra.mxu0 0.0
    %801 = vmatprep.subr.mxu0 0.0
    %802 = vmatpush1.msra.mxu0 0.0
    %803 = vmatprep.subr.mxu0 0.0
    %804 = vmatpush1.msra.mxu0 0.0
    %805 = vmatprep.subr.mxu0 0.0
    %806 = vmatpush1.msra.mxu0 0.0
    %807 = vmatprep.subr.mxu0 0.0
    %808 = vmatpush1.msra.mxu0 0.0
    %809 = vmatprep.subr.mxu0 0.0
    %810 = vmatpush1.msra.mxu0 0.0
    %811 = vmatprep.subr.mxu0 0.0
    %812 = vmatpush1.msra.mxu0 0.0
    %813 = vmatprep.subr.mxu0 0.0
    %814 = vmatpush1.msra.mxu0 0.0
    %815 = vmatprep.subr.mxu0 0.0
    %816 = vmatpush1.msra.mxu0 0.0
    %817 = vmatprep.subr.mxu0 0.0
    %818 = vmatpush1.msra.mxu0 0.0
    %819 = vmatprep.subr.mxu0 0.0
    %820 = vmatpush1.msra.mxu0 0.0
    %821 = vmatprep.subr.mxu0 0.0
    %822 = vmatpush1.msra.mxu0 0.0
    %823 = vmatprep.subr.mxu0 0.0
    %824 = vmatpush1.msra.mxu0 0.0
    %825 = vmatprep.subr.mxu0 0.0
    %826 = vmatpush1.msra.mxu0 0.0
    %827 = vmatprep.subr.mxu0 0.0
    %828 = vmatpush1.msra.mxu0 0.0
    %829 = vmatprep.subr.mxu0 0.0
    %830 = vmatpush1.msra.mxu0 0.0
    %831 = vmatprep.subr.mxu0 0.0
    %832 = vmatpush1.msra.mxu0 0.0
    %833 = vmatprep.subr.mxu0 0.0
    %834 = vmatpush1.msra.mxu0 0.0
    %835 = vmatprep.mubr.f32.mxu0 0.0
    %836 = vmatmul.mubr.f32.gmra.mrb[0].mxu0 %v769
    %v837 = vpop.f32.mrb[0].mxu0
    %v838 = vadd.f32 0.0, %v837
    %v839 = vpop.f32.mrb[0].mxu0
    %840 = vdwg.mxu0
    %v841 = vadd.f32 %v838, %v244
    %v842 = vxor.u32 %v841, 2147483648
    %v843 = vmul.f32 %v842, 1.442695
    %v844 = vpow.pop %v843
    %v845 = vadd.f32 %v844, 1.0
    %v846 = vrcp.pop %v845
    %v847 = vmul.f32 1.0, %v846
    %v848 = vtanh.pop %v841
    %v849 = vmul.f32 %v847, %v714
    %851 = vrot.lane.b32.xlu0 %v848, 104
    %v852 = vpop.permute.xlu0 %851
    %v854 = vmul.f32 %v847, %v852
    %856 = vrot.lane.b32.xlu0 %v854, 12
    %v857 = vpop.permute.xlu0 %856
    %v859 = vadd.f32 %v849, %v857
    %v860 = vtanh.pop %v859
    %862 = vrot.lane.b32.xlu0 %v860, 24
    %v863 = vpop.permute.xlu0 %862
    %v865 = vmul.f32 %v847, %v863
    %vm866 = vcmp.eq.s32.totalorder %v39, 4
    %v867 = vsel %vm866, 1, 0
    %v868 = vcvt.s32.f32 %v867
    %870 = vset.pattern.permute.xlu0 0
    %871 = vperm.xlu0 %870, %v868
    %v872 = vpop.permute.xlu0 %871
    %v874 = vmul.f32 %v872, %v865
    %v875 = vadd.f32 %v730, %v874
    %v877 = vrot.slane %v838, 6
    %v879 = vadd.f32 %v131, %v877
    %v880 = vxor.u32 %v879, 2147483648
    %v881 = vmul.f32 %v880, 1.442695
    %v882 = vpow.pop %v881
    %v883 = vadd.f32 %v882, 1.0
    %v884 = vrcp.pop %v883
    %v885 = vmul.f32 1.0, %v884
    %v886 = vtanh.pop %v879
    %v888 = vrot.slane %v752, 6
    %v890 = vmul.f32 %v885, %v888
    %892 = vrot.lane.b32.xlu0 %v886, 104
    %v893 = vpop.permute.xlu0 %892
    %v895 = vmul.f32 %v885, %v893
    %897 = vrot.lane.b32.xlu0 %v895, 12
    %v898 = vpop.permute.xlu0 %897
    %v900 = vadd.f32 %v890, %v898
    %v901 = vtanh.pop %v900
    %903 = vrot.lane.b32.xlu0 %v901, 24
    %v904 = vpop.permute.xlu0 %903
    %v906 = vmul.f32 %v885, %v904
    %908 = vrot.lane.b32.xlu0 %v906, 92
    %v909 = vpop.permute.xlu0 %908
    %v912 = vrot.slane %v865, 6
    %913 = vrot.lane.b32.xlu0 %v912, 56
    %v914 = vpop.permute.xlu0 %913
    %v916 = vsel %vm162, %v909, %v914
    %v918 = vrot.slane %v916, 2
    %v919 = vsel %vm164, %v918, 0
    %921 = vmatprep.subr.mxu0 0.0
    %922 = vmatpush1.msra.mxu0 %v35
    %923 = vmatprep.subr.mxu0 0.0
    %924 = vmatpush1.msra.mxu0 %v36
    %925 = vmatprep.subr.mxu0 0.0
    %926 = vmatpush1.msra.mxu0 %v37
    %927 = vmatprep.subr.mxu0 0.0
    %928 = vmatpush1.msra.mxu0 0.0
    %929 = vmatprep.subr.mxu0 0.0
    %930 = vmatpush1.msra.mxu0 0.0
    %931 = vmatprep.subr.mxu0 0.0
    %932 = vmatpush1.msra.mxu0 0.0
    %933 = vmatprep.subr.mxu0 0.0
    %934 = vmatpush1.msra.mxu0 0.0
    %935 = vmatprep.subr.mxu0 0.0
    %936 = vmatpush1.msra.mxu0 0.0
    %937 = vmatprep.subr.mxu0 0.0
    %938 = vmatpush1.msra.mxu0 0.0
    %939 = vmatprep.subr.mxu0 0.0
    %940 = vmatpush1.msra.mxu0 0.0
    %941 = vmatprep.subr.mxu0 0.0
    %942 = vmatpush1.msra.mxu0 0.0
    %943 = vmatprep.subr.mxu0 0.0
    %944 = vmatpush1.msra.mxu0 0.0
    %945 = vmatprep.subr.mxu0 0.0
    %946 = vmatpush1.msra.mxu0 0.0
    %947 = vmatprep.subr.mxu0 0.0
    %948 = vmatpush1.msra.mxu0 0.0
    %949 = vmatprep.subr.mxu0 0.0
    %950 = vmatpush1.msra.mxu0 0.0
    %951 = vmatprep.subr.mxu0 0.0
    %952 = vmatpush1.msra.mxu0 0.0
    %953 = vmatprep.subr.mxu0 0.0
    %954 = vmatpush1.msra.mxu0 0.0
    %955 = vmatprep.subr.mxu0 0.0
    %956 = vmatpush1.msra.mxu0 0.0
    %957 = vmatprep.subr.mxu0 0.0
    %958 = vmatpush1.msra.mxu0 0.0
    %959 = vmatprep.subr.mxu0 0.0
    %960 = vmatpush1.msra.mxu0 0.0
    %961 = vmatprep.subr.mxu0 0.0
    %962 = vmatpush1.msra.mxu0 0.0
    %963 = vmatprep.subr.mxu0 0.0
    %964 = vmatpush1.msra.mxu0 0.0
    %965 = vmatprep.subr.mxu0 0.0
    %966 = vmatpush1.msra.mxu0 0.0
    %967 = vmatprep.subr.mxu0 0.0
    %968 = vmatpush1.msra.mxu0 0.0
    %969 = vmatprep.subr.mxu0 0.0
    %970 = vmatpush1.msra.mxu0 0.0
    %971 = vmatprep.subr.mxu0 0.0
    %972 = vmatpush1.msra.mxu0 0.0
    %973 = vmatprep.subr.mxu0 0.0
    %974 = vmatpush1.msra.mxu0 0.0
    %975 = vmatprep.subr.mxu0 0.0
    %976 = vmatpush1.msra.mxu0 0.0
    %977 = vmatprep.subr.mxu0 0.0
    %978 = vmatpush1.msra.mxu0 0.0
    %979 = vmatprep.subr.mxu0 0.0
    %980 = vmatpush1.msra.mxu0 0.0
    %981 = vmatprep.subr.mxu0 0.0
    %982 = vmatpush1.msra.mxu0 0.0
    %983 = vmatprep.subr.mxu0 0.0
    %984 = vmatpush1.msra.mxu0 0.0
    %985 = vmatprep.mubr.f32.mxu0 0.0
    %986 = vmatmul.mubr.f32.gmra.mrb[0].mxu0 %v919
    %v987 = vpop.f32.mrb[0].mxu0
    %v988 = vadd.f32 0.0, %v987
    %v989 = vpop.f32.mrb[0].mxu0
    %990 = vdwg.mxu0
    %v991 = vadd.f32 %v988, %v244
    %v992 = vxor.u32 %v991, 2147483648
    %v993 = vmul.f32 %v992, 1.442695
    %v994 = vpow.pop %v993
    %v995 = vadd.f32 %v994, 1.0
    %v996 = vrcp.pop %v995
    %v997 = vmul.f32 1.0, %v996
    %v998 = vtanh.pop %v991
    %v999 = vmul.f32 %v997, %v859
    %1001 = vrot.lane.b32.xlu0 %v998, 104
    %v1002 = vpop.permute.xlu0 %1001
    %v1004 = vmul.f32 %v997, %v1002
    %1006 = vrot.lane.b32.xlu0 %v1004, 12
    %v1007 = vpop.permute.xlu0 %1006
    %v1009 = vadd.f32 %v999, %v1007
    %v1010 = vtanh.pop %v1009
    %1012 = vrot.lane.b32.xlu0 %v1010, 24
    %v1013 = vpop.permute.xlu0 %1012
    %v1015 = vmul.f32 %v997, %v1013
    %vm1016 = vcmp.eq.s32.totalorder %v39, 5
    %v1017 = vsel %vm1016, 1, 0
    %v1018 = vcvt.s32.f32 %v1017
    %1020 = vset.pattern.permute.xlu0 0
    %1021 = vperm.xlu0 %1020, %v1018
    %v1022 = vpop.permute.xlu0 %1021
    %v1024 = vmul.f32 %v1022, %v1015
    %v1025 = vadd.f32 %v875, %v1024
    %v1027 = vrot.slane %v988, 4
    %v1029 = vadd.f32 %v131, %v1027
    %v1030 = vxor.u32 %v1029, 2147483648
    %v1031 = vmul.f32 %v1030, 1.442695
    %v1032 = vpow.pop %v1031
    %v1033 = vadd.f32 %v1032, 1.0
    %v1034 = vrcp.pop %v1033
    %v1035 = vmul.f32 1.0, %v1034
    %v1036 = vtanh.pop %v1029
    %v1038 = vrot.slane %v900, 6
    %v1040 = vmul.f32 %v1035, %v1038
    %1042 = vrot.lane.b32.xlu0 %v1036, 104
    %v1043 = vpop.permute.xlu0 %1042
    %v1045 = vmul.f32 %v1035, %v1043
    %1047 = vrot.lane.b32.xlu0 %v1045, 12
    %v1048 = vpop.permute.xlu0 %1047
    %v1050 = vadd.f32 %v1040, %v1048
    %v1051 = vtanh.pop %v1050
    %1053 = vrot.lane.b32.xlu0 %v1051, 24
    %v1054 = vpop.permute.xlu0 %1053
    %v1056 = vmul.f32 %v1035, %v1054
    %1058 = vrot.lane.b32.xlu0 %v1056, 92
    %v1059 = vpop.permute.xlu0 %1058
    %v1062 = vrot.slane %v1015, 4
    %1063 = vrot.lane.b32.xlu0 %v1062, 56
    %v1064 = vpop.permute.xlu0 %1063
    %v1066 = vsel %vm162, %v1059, %v1064
    %v1068 = vrot.slane %v1066, 4
    %v1069 = vsel %vm164, %v1068, 0
    %1071 = vmatprep.subr.mxu0 0.0
    %1072 = vmatpush1.msra.mxu0 %v35
    %1073 = vmatprep.subr.mxu0 0.0
    %1074 = vmatpush1.msra.mxu0 %v36
    %1075 = vmatprep.subr.mxu0 0.0
    %1076 = vmatpush1.msra.mxu0 %v37
    %1077 = vmatprep.subr.mxu0 0.0
    %1078 = vmatpush1.msra.mxu0 0.0
    %1079 = vmatprep.subr.mxu0 0.0
    %1080 = vmatpush1.msra.mxu0 0.0
    %1081 = vmatprep.subr.mxu0 0.0
    %1082 = vmatpush1.msra.mxu0 0.0
    %1083 = vmatprep.subr.mxu0 0.0
    %1084 = vmatpush1.msra.mxu0 0.0
    %1085 = vmatprep.subr.mxu0 0.0
    %1086 = vmatpush1.msra.mxu0 0.0
    %1087 = vmatprep.subr.mxu0 0.0
    %1088 = vmatpush1.msra.mxu0 0.0
    %1089 = vmatprep.subr.mxu0 0.0
    %1090 = vmatpush1.msra.mxu0 0.0
    %1091 = vmatprep.subr.mxu0 0.0
    %1092 = vmatpush1.msra.mxu0 0.0
    %1093 = vmatprep.subr.mxu0 0.0
    %1094 = vmatpush1.msra.mxu0 0.0
    %1095 = vmatprep.subr.mxu0 0.0
    %1096 = vmatpush1.msra.mxu0 0.0
    %1097 = vmatprep.subr.mxu0 0.0
    %1098 = vmatpush1.msra.mxu0 0.0
    %1099 = vmatprep.subr.mxu0 0.0
    %1100 = vmatpush1.msra.mxu0 0.0
    %1101 = vmatprep.subr.mxu0 0.0
    %1102 = vmatpush1.msra.mxu0 0.0
    %1103 = vmatprep.subr.mxu0 0.0
    %1104 = vmatpush1.msra.mxu0 0.0
    %1105 = vmatprep.subr.mxu0 0.0
    %1106 = vmatpush1.msra.mxu0 0.0
    %1107 = vmatprep.subr.mxu0 0.0
    %1108 = vmatpush1.msra.mxu0 0.0
    %1109 = vmatprep.subr.mxu0 0.0
    %1110 = vmatpush1.msra.mxu0 0.0
    %1111 = vmatprep.subr.mxu0 0.0
    %1112 = vmatpush1.msra.mxu0 0.0
    %1113 = vmatprep.subr.mxu0 0.0
    %1114 = vmatpush1.msra.mxu0 0.0
    %1115 = vmatprep.subr.mxu0 0.0
    %1116 = vmatpush1.msra.mxu0 0.0
    %1117 = vmatprep.subr.mxu0 0.0
    %1118 = vmatpush1.msra.mxu0 0.0
    %1119 = vmatprep.subr.mxu0 0.0
    %1120 = vmatpush1.msra.mxu0 0.0
    %1121 = vmatprep.subr.mxu0 0.0
    %1122 = vmatpush1.msra.mxu0 0.0
    %1123 = vmatprep.subr.mxu0 0.0
    %1124 = vmatpush1.msra.mxu0 0.0
    %1125 = vmatprep.subr.mxu0 0.0
    %1126 = vmatpush1.msra.mxu0 0.0
    %1127 = vmatprep.subr.mxu0 0.0
    %1128 = vmatpush1.msra.mxu0 0.0
    %1129 = vmatprep.subr.mxu0 0.0
    %1130 = vmatpush1.msra.mxu0 0.0
    %1131 = vmatprep.subr.mxu0 0.0
    %1132 = vmatpush1.msra.mxu0 0.0
    %1133 = vmatprep.subr.mxu0 0.0
    %1134 = vmatpush1.msra.mxu0 0.0
    %1135 = vmatprep.mubr.f32.mxu0 0.0
    %1136 = vmatmul.mubr.f32.gmra.mrb[0].mxu0 %v1069
    %v1137 = vpop.f32.mrb[0].mxu0
    %v1138 = vadd.f32 0.0, %v1137
    %v1139 = vpop.f32.mrb[0].mxu0
    %1140 = vdwg.mxu0
    %v1141 = vadd.f32 %v1138, %v244
    %v1142 = vxor.u32 %v1141, 2147483648
    %v1143 = vmul.f32 %v1142, 1.442695
    %v1144 = vpow.pop %v1143
    %v1145 = vadd.f32 %v1144, 1.0
    %v1146 = vrcp.pop %v1145
    %v1147 = vmul.f32 1.0, %v1146
    %v1148 = vtanh.pop %v1141
    %v1149 = vmul.f32 %v1147, %v1009
    %1151 = vrot.lane.b32.xlu0 %v1148, 104
    %v1152 = vpop.permute.xlu0 %1151
    %v1154 = vmul.f32 %v1147, %v1152
    %1156 = vrot.lane.b32.xlu0 %v1154, 12
    %v1157 = vpop.permute.xlu0 %1156
    %v1159 = vadd.f32 %v1149, %v1157
    %v1160 = vtanh.pop %v1159
    %1162 = vrot.lane.b32.xlu0 %v1160, 24
    %v1163 = vpop.permute.xlu0 %1162
    %v1165 = vmul.f32 %v1147, %v1163
    %vm1166 = vcmp.eq.s32.totalorder %v39, 6
    %v1167 = vsel %vm1166, 1, 0
    %v1168 = vcvt.s32.f32 %v1167
    %1170 = vset.pattern.permute.xlu0 0
    %1171 = vperm.xlu0 %1170, %v1168
    %v1172 = vpop.permute.xlu0 %1171
    %v1174 = vmul.f32 %v1172, %v1165
    %v1175 = vadd.f32 %v1025, %v1174
    %v1177 = vrot.slane %v1138, 2
    %v1179 = vadd.f32 %v131, %v1177
    %v1180 = vxor.u32 %v1179, 2147483648
    %v1181 = vmul.f32 %v1180, 1.442695
    %v1182 = vpow.pop %v1181
    %v1183 = vadd.f32 %v1182, 1.0
    %v1184 = vrcp.pop %v1183
    %v1185 = vmul.f32 1.0, %v1184
    %v1186 = vtanh.pop %v1179
    %v1188 = vrot.slane %v1050, 6
    %v1190 = vmul.f32 %v1185, %v1188
    %1192 = vrot.lane.b32.xlu0 %v1186, 104
    %v1193 = vpop.permute.xlu0 %1192
    %v1195 = vmul.f32 %v1185, %v1193
    %1197 = vrot.lane.b32.xlu0 %v1195, 12
    %v1198 = vpop.permute.xlu0 %1197
    %v1200 = vadd.f32 %v1190, %v1198
    %v1201 = vtanh.pop %v1200
    %1203 = vrot.lane.b32.xlu0 %v1201, 24
    %v1204 = vpop.permute.xlu0 %1203
    %v1206 = vmul.f32 %v1185, %v1204
    %1208 = vrot.lane.b32.xlu0 %v1206, 92
    %v1209 = vpop.permute.xlu0 %1208
    %v1212 = vrot.slane %v1165, 2
    %1213 = vrot.lane.b32.xlu0 %v1212, 56
    %v1214 = vpop.permute.xlu0 %1213
    %v1216 = vsel %vm162, %v1209, %v1214
    %v1218 = vrot.slane %v1216, 6
    %v1219 = vsel %vm164, %v1218, 0
    %1221 = vmatprep.subr.mxu0 0.0
    %1222 = vmatpush1.msra.mxu0 %v35
    %1223 = vmatprep.subr.mxu0 0.0
    %1224 = vmatpush1.msra.mxu0 %v36
    %1225 = vmatprep.subr.mxu0 0.0
    %1226 = vmatpush1.msra.mxu0 %v37
    %1227 = vmatprep.subr.mxu0 0.0
    %1228 = vmatpush1.msra.mxu0 0.0
    %1229 = vmatprep.subr.mxu0 0.0
    %1230 = vmatpush1.msra.mxu0 0.0
    %1231 = vmatprep.subr.mxu0 0.0
    %1232 = vmatpush1.msra.mxu0 0.0
    %1233 = vmatprep.subr.mxu0 0.0
    %1234 = vmatpush1.msra.mxu0 0.0
    %1235 = vmatprep.subr.mxu0 0.0
    %1236 = vmatpush1.msra.mxu0 0.0
    %1237 = vmatprep.subr.mxu0 0.0
    %1238 = vmatpush1.msra.mxu0 0.0
    %1239 = vmatprep.subr.mxu0 0.0
    %1240 = vmatpush1.msra.mxu0 0.0
    %1241 = vmatprep.subr.mxu0 0.0
    %1242 = vmatpush1.msra.mxu0 0.0
    %1243 = vmatprep.subr.mxu0 0.0
    %1244 = vmatpush1.msra.mxu0 0.0
    %1245 = vmatprep.subr.mxu0 0.0
    %1246 = vmatpush1.msra.mxu0 0.0
    %1247 = vmatprep.subr.mxu0 0.0
    %1248 = vmatpush1.msra.mxu0 0.0
    %1249 = vmatprep.subr.mxu0 0.0
    %1250 = vmatpush1.msra.mxu0 0.0
    %1251 = vmatprep.subr.mxu0 0.0
    %1252 = vmatpush1.msra.mxu0 0.0
    %1253 = vmatprep.subr.mxu0 0.0
    %1254 = vmatpush1.msra.mxu0 0.0
    %1255 = vmatprep.subr.mxu0 0.0
    %1256 = vmatpush1.msra.mxu0 0.0
    %1257 = vmatprep.subr.mxu0 0.0
    %1258 = vmatpush1.msra.mxu0 0.0
    %1259 = vmatprep.subr.mxu0 0.0
    %1260 = vmatpush1.msra.mxu0 0.0
    %1261 = vmatprep.subr.mxu0 0.0
    %1262 = vmatpush1.msra.mxu0 0.0
    %1263 = vmatprep.subr.mxu0 0.0
    %1264 = vmatpush1.msra.mxu0 0.0
    %1265 = vmatprep.subr.mxu0 0.0
    %1266 = vmatpush1.msra.mxu0 0.0
    %1267 = vmatprep.subr.mxu0 0.0
    %1268 = vmatpush1.msra.mxu0 0.0
    %1269 = vmatprep.subr.mxu0 0.0
    %1270 = vmatpush1.msra.mxu0 0.0
    %1271 = vmatprep.subr.mxu0 0.0
    %1272 = vmatpush1.msra.mxu0 0.0
    %1273 = vmatprep.subr.mxu0 0.0
    %1274 = vmatpush1.msra.mxu0 0.0
    %1275 = vmatprep.subr.mxu0 0.0
    %1276 = vmatpush1.msra.mxu0 0.0
    %1277 = vmatprep.subr.mxu0 0.0
    %1278 = vmatpush1.msra.mxu0 0.0
    %1279 = vmatprep.subr.mxu0 0.0
    %1280 = vmatpush1.msra.mxu0 0.0
    %1281 = vmatprep.subr.mxu0 0.0
    %1282 = vmatpush1.msra.mxu0 0.0
    %1283 = vmatprep.subr.mxu0 0.0
    %1284 = vmatpush1.msra.mxu0 0.0
    %1285 = vmatprep.mubr.f32.mxu0 0.0
    %1286 = vmatmul.mubr.f32.gmra.mrb[0].mxu0 %v1219
    %v1287 = vpop.f32.mrb[0].mxu0
    %v1288 = vadd.f32 0.0, %v1287
    %v1289 = vpop.f32.mrb[0].mxu0
    %1290 = vdwg.mxu0
    %v1291 = vadd.f32 %v1288, %v244
    %v1292 = vxor.u32 %v1291, 2147483648
    %v1293 = vmul.f32 %v1292, 1.442695
    %v1294 = vpow.pop %v1293
    %v1295 = vadd.f32 %v1294, 1.0
    %v1296 = vrcp.pop %v1295
    %v1297 = vmul.f32 1.0, %v1296
    %v1298 = vtanh.pop %v1291
    %v1299 = vmul.f32 %v1297, %v1159
    %1301 = vrot.lane.b32.xlu0 %v1298, 104
    %v1302 = vpop.permute.xlu0 %1301
    %v1304 = vmul.f32 %v1297, %v1302
    %1306 = vrot.lane.b32.xlu0 %v1304, 12
    %v1307 = vpop.permute.xlu0 %1306
    %v1309 = vadd.f32 %v1299, %v1307
    %v1310 = vtanh.pop %v1309
    %1312 = vrot.lane.b32.xlu0 %v1310, 24
    %v1313 = vpop.permute.xlu0 %1312
    %v1315 = vmul.f32 %v1297, %v1313
    %vm1316 = vcmp.eq.s32.totalorder %v39, 7
    %v1317 = vsel %vm1316, 1, 0
    %v1318 = vcvt.s32.f32 %v1317
    %1320 = vset.pattern.permute.xlu0 0
    %1321 = vperm.xlu0 %1320, %v1318
    %v1322 = vpop.permute.xlu0 %1321
    %v1324 = vmul.f32 %v1322, %v1315
    %v1325 = vadd.f32 %v1175, %v1324
    %1327 = vrot.lane.b32.xlu0 %v1325, 44
    %v1328 = vpop.permute.xlu0 %1327
    %vm1330 = vcmask 91136
    %1331 = vst.msk [vmem:[#allocation4] sm:$0x3] %vm1330, %v1328
    %v1332 = vld [vmem:[%s6] sm:$0xff]
    %v1333 = vld [vmem:[%s6 + $0x8] sm:$0xf]
    %v1334 = vld [vmem:[%s7] sm:$0x1]
    %v1336 = vlaneseq
    %v1337 = vshrl.u32 %v1336, 7
    %v1338 = vsub.s32 0, %v1337
    %v1339 = vrot.slane %v1334, %v1338
    %v1341 = vsel %vm162, %v1328, 0
    %v1344 = vsel %vm55, %v1333, 0
    %1346 = vmatprep.subr.mxu0 0.0
    %1347 = vmatpush1.msra.mxu0 %v1332
    %1348 = vmatprep.subr.mxu0 0.0
    %1349 = vmatpush1.msra.mxu0 %v1344
    %1350 = vmatprep.subr.mxu0 0.0
    %1351 = vmatpush1.msra.mxu0 0.0
    %1352 = vmatprep.subr.mxu0 0.0
    %1353 = vmatpush1.msra.mxu0 0.0
    %1354 = vmatprep.subr.mxu0 0.0
    %1355 = vmatpush1.msra.mxu0 0.0
    %1356 = vmatprep.subr.mxu0 0.0
    %1357 = vmatpush1.msra.mxu0 0.0
    %1358 = vmatprep.subr.mxu0 0.0
    %1359 = vmatpush1.msra.mxu0 0.0
    %1360 = vmatprep.subr.mxu0 0.0
    %1361 = vmatpush1.msra.mxu0 0.0
    %1362 = vmatprep.subr.mxu0 0.0
    %1363 = vmatpush1.msra.mxu0 0.0
    %1364 = vmatprep.subr.mxu0 0.0
    %1365 = vmatpush1.msra.mxu0 0.0
    %1366 = vmatprep.subr.mxu0 0.0
    %1367 = vmatpush1.msra.mxu0 0.0
    %1368 = vmatprep.subr.mxu0 0.0
    %1369 = vmatpush1.msra.mxu0 0.0
    %1370 = vmatprep.subr.mxu0 0.0
    %1371 = vmatpush1.msra.mxu0 0.0
    %1372 = vmatprep.subr.mxu0 0.0
    %1373 = vmatpush1.msra.mxu0 0.0
    %1374 = vmatprep.subr.mxu0 0.0
    %1375 = vmatpush1.msra.mxu0 0.0
    %1376 = vmatprep.subr.mxu0 0.0
    %1377 = vmatpush1.msra.mxu0 0.0
    %1378 = vmatprep.subr.mxu0 0.0
    %1379 = vmatpush1.msra.mxu0 0.0
    %1380 = vmatprep.subr.mxu0 0.0
    %1381 = vmatpush1.msra.mxu0 0.0
    %1382 = vmatprep.subr.mxu0 0.0
    %1383 = vmatpush1.msra.mxu0 0.0
    %1384 = vmatprep.subr.mxu0 0.0
    %1385 = vmatpush1.msra.mxu0 0.0
    %1386 = vmatprep.subr.mxu0 0.0
    %1387 = vmatpush1.msra.mxu0 0.0
    %1388 = vmatprep.subr.mxu0 0.0
    %1389 = vmatpush1.msra.mxu0 0.0
    %1390 = vmatprep.subr.mxu0 0.0
    %1391 = vmatpush1.msra.mxu0 0.0
    %1392 = vmatprep.subr.mxu0 0.0
    %1393 = vmatpush1.msra.mxu0 0.0
    %1394 = vmatprep.subr.mxu0 0.0
    %1395 = vmatpush1.msra.mxu0 0.0
    %1396 = vmatprep.subr.mxu0 0.0
    %1397 = vmatpush1.msra.mxu0 0.0
    %1398 = vmatprep.subr.mxu0 0.0
    %1399 = vmatpush1.msra.mxu0 0.0
    %1400 = vmatprep.subr.mxu0 0.0
    %1401 = vmatpush1.msra.mxu0 0.0
    %1402 = vmatprep.subr.mxu0 0.0
    %1403 = vmatpush1.msra.mxu0 0.0
    %1404 = vmatprep.subr.mxu0 0.0
    %1405 = vmatpush1.msra.mxu0 0.0
    %1406 = vmatprep.subr.mxu0 0.0
    %1407 = vmatpush1.msra.mxu0 0.0
    %1408 = vmatprep.subr.mxu0 0.0
    %1409 = vmatpush1.msra.mxu0 0.0
    %1410 = vmatprep.mubr.f32.mxu0 0.0
    %1411 = vmatmul.mubr.f32.gmra.mrb[0].mxu0 %v1341
    %v1412 = vpop.f32.mrb[0].mxu0
    %v1413 = vadd.f32 %v1339, %v1412
    %v1414 = vpop.f32.mrb[0].mxu0
    %1415 = vdwg.mxu0
    %vm1416 = vcmask 9216
    %1417 = vst.msk [vmem:[#allocation2] sm:$0x3] %vm1416, %v1413
    // Predicated region
    $region34: #{tpu_custom_call.1} parent=1 // pred_check
      _
    $region35: #{tpu_custom_call.1} parent=1 // pred_check_branch
      %1419 = sbr.rel (0) target = $region37
    $region36: #{tpu_custom_call.1} parent=1 // pred_region
      %s1421 = ssub.s32 32, 32
      %1422 = vsyncadd [#allocation3], %s1421
      %s1424 = sshll.u32 [#allocation2], 4
      %s1425 = int_to_ptr.vmem [resolvable:$true] %s1424
      %1427 = dma.vmem_to_hbm [thread:$0]  %s1425, 32, %s8, [#allocation3]
    $region37: #{tpu_custom_call.1} parent=1 // pred_fallthru
      _
    // Predicated region
    $region38: #{tpu_custom_call.1} parent=1 // pred_check
      _
    $region39: #{tpu_custom_call.1} parent=1 // pred_check_branch
      %1429 = sbr.rel (0) target = $region41
    $region40: #{tpu_custom_call.1} parent=1 // pred_region
      %s1431 = ssub.s32 32, 32
      %1432 = vsyncadd [#allocation5], %s1431
      %s1434 = sshll.u32 [#allocation4], 4
      %s1435 = int_to_ptr.vmem [resolvable:$true] %s1434
      %1437 = dma.vmem_to_hbm [thread:$0]  %s1435, 32, %s9, [#allocation5]
    $region41: #{tpu_custom_call.1} parent=1 // pred_fallthru
      _
    // Predicated region
    $region42: #{tpu_custom_call.1} parent=1 // pred_check
      _
    $region43: #{tpu_custom_call.1} parent=1 // pred_check_branch
      %1439 = sbr.rel (0) target = $region45
    $region44: #{tpu_custom_call.1} parent=1 // pred_region
      %1440 = dma.done [#allocation3], 32
    $region45: #{tpu_custom_call.1} parent=1 // pred_fallthru
      _
    // Predicated region
    $region46: #{tpu_custom_call.1} parent=1 // pred_check
      _
    $region47: #{tpu_custom_call.1} parent=1 // pred_check_branch
      %1442 = sbr.rel (0) target = $region49
    $region48: #{tpu_custom_call.1} parent=1 // pred_region
      %1443 = dma.done [#allocation5], 32
    $region49: #{tpu_custom_call.1} parent=1 // pred_fallthru
      _
    %1444 = vsyncpa [#allocation3], 1
    %1445 = vsyncpa [#allocation5], 1

</llo_original>
